<compile_context>
chip_gen: v7x
topology: tpu7x:2x2x1
jax: 0.10.0
libtpu: 0.0.40
codegen_flags: <defaults>
</compile_context>

<pallas_src>
import jax
import jax.numpy as jnp
from jax.experimental import pallas as pl
from jax.experimental.pallas import tpu as pltpu

S_DIM = 35
A_DIM = 17
SA_DIM = S_DIM + A_DIM          # 52
HID = 600
HID_PAD = 640                   # 5 * 128 lanes, exact zero-padding


def _round_up(x, m):
    return ((x + m - 1) // m) * m


def critic_kernel(sa_ref, w1_ref, b1_ref, w2_ref, b2_ref, wo_ref, bo_ref, out_ref):
    # Fused fcs/fca: one bf16 MXU dot on the concatenated [s|a] tile, f32 accumulate.
    h = jnp.dot(sa_ref[...].astype(jnp.bfloat16), w1_ref[...],
                preferred_element_type=jnp.float32) + b1_ref[...]
    h = jnp.maximum(h, 0.0)
    # fcas: bf16 weights, f32 accumulation; relu in f32 (v5e VPU has no bf16).
    z = jnp.dot(h.astype(jnp.bfloat16), w2_ref[...],
                preferred_element_type=jnp.float32) + b2_ref[...]
    zr = jnp.maximum(z, 0.0)
    # Output head (out_features == 1): VPU multiply + XLU lane reduction instead of
    # an N=1 MXU matmul that would waste >99% of the systolic array.
    out_ref[...] = jnp.sum(zr * wo_ref[...], axis=-1, keepdims=True) + bo_ref[...]


def prepare_params(params):
    """One-time weight prep: (in, out) layout, fused first layer, zero-pad HID->640,
    bf16 cast for the MXU operands. Call once, reuse across forward calls."""
    ws, bs, wa, ba, was, bas, wo, bo = params

    w1 = jnp.concatenate([ws, wa], axis=1).T        # (52, 600)   [s|a] weight
    b1 = (bs + ba).reshape(1, HID)                  # fused bias
    w2 = was.T                                      # (600, 600)
    b2 = bas.reshape(1, HID)
    wo_row = wo.reshape(1, HID)
    bo_r = bo.reshape(1, 1)

    ph = HID_PAD - HID
    w1 = jnp.pad(w1, ((0, 0), (0, ph))).astype(jnp.bfloat16)     # (52, 640) bf16
    b1 = jnp.pad(b1, ((0, 0), (0, ph)))                          # (1, 640) f32
    w2 = jnp.pad(w2, ((0, ph), (0, ph))).astype(jnp.bfloat16)    # (640, 640) bf16
    b2 = jnp.pad(b2, ((0, 0), (0, ph)))                          # (1, 640) f32
    wo_row = jnp.pad(wo_row, ((0, 0), (0, ph)))                  # (1, 640) f32
    return (w1, b1, w2, b2, wo_row, bo_r)


@jax.jit
def critic_forward(s, a, prepared):
    """s: (B, S_DIM) f32, a: (B, A_DIM) f32 -> (B, 1) f32."""
    w1, b1, w2, b2, wo_row, bo = prepared
    B = s.shape[0]
    sa = jnp.concatenate([s.astype(jnp.float32), a.astype(jnp.float32)], axis=-1)

    # Batch tiling: whole batch for small B (rounded to sublanes), 256-row tiles
    # (full v6e MXU M) for large B. Weights stay VMEM-resident across the grid.
    block_b = 256 if B >= 256 else _round_up(max(B, 1), 8)
    b_pad = _round_up(B, block_b)
    if b_pad != B:
        sa = jnp.pad(sa, ((0, b_pad - B), (0, 0)))
    grid = (b_pad // block_b,)

    out = pl.pallas_call(
        critic_kernel,
        out_shape=jax.ShapeDtypeStruct((b_pad, 1), jnp.float32),
        grid=grid,
        in_specs=[
            pl.BlockSpec((block_b, SA_DIM), lambda i: (i, 0)),       # activations: pipelined
            pl.BlockSpec((SA_DIM, HID_PAD), lambda i: (0, 0)),       # weights: resident
            pl.BlockSpec((1, HID_PAD), lambda i: (0, 0)),
            pl.BlockSpec((HID_PAD, HID_PAD), lambda i: (0, 0)),
            pl.BlockSpec((1, HID_PAD), lambda i: (0, 0)),
            pl.BlockSpec((1, HID_PAD), lambda i: (0, 0)),
            pl.BlockSpec((1, 1), lambda i: (0, 0)),
        ],
        out_specs=pl.BlockSpec((block_b, 1), lambda i: (i, 0)),
        compiler_params=pltpu.CompilerParams(
            dimension_semantics=("parallel",)),                      # megacore / v7x 2-TC split
    )(sa, w1, b1, w2, b2, wo_row, bo)
    return out[:B]


def init_params(key):
    """Mirror the PyTorch __init__: weights ~ N(0, 0.01); biases keep the
    nn.Linear default U(-1/sqrt(fan_in), 1/sqrt(fan_in))."""
    ks = jax.random.split(key, 8)

    def w(k, shape):
        return 0.01 * jax.random.normal(k, shape, dtype=jnp.float32)

    def b(k, fan_in, n):
        bound = 1.0 / jnp.sqrt(jnp.float32(fan_in))
        return jax.random.uniform(k, (n,), dtype=jnp.float32, minval=-bound, maxval=bound)

    ws = w(ks[0], (HID, S_DIM));   bs = b(ks[1], S_DIM, HID)
    wa = w(ks[2], (HID, A_DIM));   ba = b(ks[3], A_DIM, HID)
    was = w(ks[4], (HID, HID));    bas = b(ks[5], HID, HID)
    wo = w(ks[6], (1, HID));       bo = b(ks[7], HID, 1)
    return (ws, bs, wa, ba, was, bas, wo, bo)


def reference_f32(s, a, params):
    """Exact f32 PyTorch semantics."""
    ws, bs, wa, ba, was, bas, wo, bo = params
    x = s @ ws.T + bs
    y = a @ wa.T + ba
    z = jnp.maximum(x + y, 0.0) @ was.T + bas
    return jnp.maximum(z, 0.0) @ wo.T + bo


def reference_bf16(s, a, params):
    """Same math as the kernel (bf16 MXU operands, f32 accumulation) in plain JAX."""
    ws, bs, wa, ba, was, bas, wo, bo = params
    sa = jnp.concatenate([s, a], axis=-1).astype(jnp.bfloat16)
    w1 = jnp.concatenate([ws, wa], axis=1).T.astype(jnp.bfloat16)
    h = jnp.maximum(jnp.dot(sa, w1, preferred_element_type=jnp.float32) + (bs + ba), 0.0)
    z = jnp.dot(h.astype(jnp.bfloat16), was.T.astype(jnp.bfloat16),
                preferred_element_type=jnp.float32) + bas
    zr = jnp.maximum(z, 0.0)
    return jnp.sum(zr * wo.reshape(1, -1), axis=-1, keepdims=True) + bo.reshape(1, 1)


if __name__ == "__main__":
    key = jax.random.PRNGKey(0)
    kp = jax.random.fold_in(key, 7)

    params = init_params(kp)
    prepared = prepare_params(params)   # one-time weight prep (no per-call transposes)

    for B in (8, 13):                   # 13 exercises the batch-padding path
        ksb, kab = jax.random.split(jax.random.fold_in(key, B))
        s = jax.random.normal(ksb, (B, S_DIM), dtype=jnp.float32)
        a = jax.random.normal(kab, (B, A_DIM), dtype=jnp.float32)

        out = jax.block_until_ready(critic_forward(s, a, prepared))
        assert out.shape == (B, 1)

        ref_q = reference_bf16(s, a, params)   # same quantization -> tight match
        ref_x = reference_f32(s, a, params)    # exact f32 -> loose sanity check
        assert jnp.allclose(out, ref_q, atol=1e-4, rtol=1e-3), "mismatch vs bf16-emulated ref"
        assert jnp.allclose(out, ref_x, atol=1e-2, rtol=5e-2), "mismatch vs f32 ref"

    print("KERNEL_OK")
</pallas_src>

<mosaic_0001>
module attributes {stable_mosaic.version = 11 : i64} {
  func.func @critic_kernel(%arg0: i32, %arg1: memref<8x52xf32, #tpu.memory_space<vmem>>, %arg2: memref<52x640xbf16, #tpu.memory_space<vmem>>, %arg3: memref<1x640xf32, #tpu.memory_space<vmem>>, %arg4: memref<640x640xbf16, #tpu.memory_space<vmem>>, %arg5: memref<1x640xf32, #tpu.memory_space<vmem>>, %arg6: memref<1x640xf32, #tpu.memory_space<vmem>>, %arg7: memref<1x1xf32, #tpu.memory_space<vmem>>, %arg8: memref<8x1xf32, #tpu.memory_space<vmem>>) attributes {dimension_semantics = [#tpu.dimension_semantics<parallel>], iteration_bounds = array<i64: 1>, scalar_prefetch = 0 : i64, scratch_operands = 0 : i64, tpu.core_type = #tpu.core_type<tc>, window_params = [{transform_indices = @transform_0, window_bounds = array<i64: 8, 52>}, {pipeline_mode = #tpu.pipeline_mode<synchronous>, transform_indices = @transform_1, window_bounds = array<i64: 52, 640>}, {pipeline_mode = #tpu.pipeline_mode<synchronous>, transform_indices = @transform_2, window_bounds = array<i64: 1, 640>}, {pipeline_mode = #tpu.pipeline_mode<synchronous>, transform_indices = @transform_3, window_bounds = array<i64: 640, 640>}, {pipeline_mode = #tpu.pipeline_mode<synchronous>, transform_indices = @transform_4, window_bounds = array<i64: 1, 640>}, {pipeline_mode = #tpu.pipeline_mode<synchronous>, transform_indices = @transform_5, window_bounds = array<i64: 1, 640>}, {pipeline_mode = #tpu.pipeline_mode<synchronous>, transform_indices = @transform_6, window_bounds = array<i64: 1, 1>}, {transform_indices = @transform_7, window_bounds = array<i64: 8, 1>}]} {
    %c0 = arith.constant 0 : index
    %c0_0 = arith.constant 0 : index
    %0 = vector.load %arg1[%c0, %c0_0] : memref<8x52xf32, #tpu.memory_space<vmem>>, vector<8x52xf32>
    %1 = arith.truncf %0 : vector<8x52xf32> to vector<8x52xbf16>
    %c0_1 = arith.constant 0 : index
    %c0_2 = arith.constant 0 : index
    %2 = vector.load %arg2[%c0_1, %c0_2] : memref<52x640xbf16, #tpu.memory_space<vmem>>, vector<52x640xbf16>
    %cst = arith.constant dense<0.000000e+00> : vector<8x640xf32>
    %3 = tpu.matmul %1, %2, %cst {dimension_numbers = #tpu.dot_dimension_numbers<[1], [0], [0], [1], [0, 0, 1, 1], [], []>} : vector<8x52xbf16>, vector<52x640xbf16>, vector<8x640xf32> -> vector<8x640xf32>
    %c0_3 = arith.constant 0 : index
    %c0_4 = arith.constant 0 : index
    %4 = vector.load %arg3[%c0_3, %c0_4] : memref<1x640xf32, #tpu.memory_space<vmem>>, vector<1x640xf32>
    %5 = vector.broadcast %4 : vector<1x640xf32> to vector<8x640xf32>
    %6 = arith.addf %3, %5 : vector<8x640xf32>
    %cst_5 = arith.constant 0.000000e+00 : f32
    %7 = vector.broadcast %cst_5 : f32 to vector<8x640xf32>
    %8 = arith.maximumf %6, %7 : vector<8x640xf32>
    %9 = arith.truncf %8 : vector<8x640xf32> to vector<8x640xbf16>
    %c0_6 = arith.constant 0 : index
    %c0_7 = arith.constant 0 : index
    %10 = vector.load %arg4[%c0_6, %c0_7] : memref<640x640xbf16, #tpu.memory_space<vmem>>, vector<640x640xbf16>
    %cst_8 = arith.constant dense<0.000000e+00> : vector<8x640xf32>
    %11 = tpu.matmul %9, %10, %cst_8 {dimension_numbers = #tpu.dot_dimension_numbers<[1], [0], [0], [1], [0, 0, 1, 1], [], []>} : vector<8x640xbf16>, vector<640x640xbf16>, vector<8x640xf32> -> vector<8x640xf32>
    %c0_9 = arith.constant 0 : index
    %c0_10 = arith.constant 0 : index
    %12 = vector.load %arg5[%c0_9, %c0_10] : memref<1x640xf32, #tpu.memory_space<vmem>>, vector<1x640xf32>
    %13 = vector.broadcast %12 : vector<1x640xf32> to vector<8x640xf32>
    %14 = arith.addf %11, %13 : vector<8x640xf32>
    %cst_11 = arith.constant 0.000000e+00 : f32
    %15 = vector.broadcast %cst_11 : f32 to vector<8x640xf32>
    %16 = arith.maximumf %14, %15 : vector<8x640xf32>
    %c0_12 = arith.constant 0 : index
    %c0_13 = arith.constant 0 : index
    %17 = vector.load %arg6[%c0_12, %c0_13] : memref<1x640xf32, #tpu.memory_space<vmem>>, vector<1x640xf32>
    %18 = vector.broadcast %17 : vector<1x640xf32> to vector<8x640xf32>
    %19 = arith.mulf %16, %18 : vector<8x640xf32>
    %cst_14 = arith.constant dense<0.000000e+00> : vector<8xf32>
    %20 = vector.multi_reduction <add>, %19, %cst_14 [1] : vector<8x640xf32> to vector<8xf32>
    %21 = vector.shape_cast %20 : vector<8xf32> to vector<8x1xf32>
    %c0_15 = arith.constant 0 : index
    %c0_16 = arith.constant 0 : index
    %22 = vector.load %arg7[%c0_15, %c0_16] : memref<1x1xf32, #tpu.memory_space<vmem>>, vector<1x1xf32>
    %23 = vector.broadcast %22 : vector<1x1xf32> to vector<8x1xf32>
    %24 = arith.addf %21, %23 : vector<8x1xf32>
    %c0_17 = arith.constant 0 : index
    %c0_18 = arith.constant 0 : index
    %25 = vector.load %arg8[%c0_17, %c0_18] : memref<8x1xf32, #tpu.memory_space<vmem>>, vector<8x1xf32>
    tpu.vector_store %arg8[%c0_17, %c0_18], %24 {strides = array<i32>} : memref<8x1xf32, #tpu.memory_space<vmem>>, vector<8x1xf32>,
    return
  }
  func.func @transform_0(%arg0: i32) -> (i32, i32) {
    %c0_i32 = arith.constant 0 : i32
    %c0_i32_0 = arith.constant 0 : i32
    return %arg0, %c0_i32 : i32, i32
  }
  func.func @transform_1(%arg0: i32) -> (i32, i32) {
    %c0_i32 = arith.constant 0 : i32
    %c0_i32_0 = arith.constant 0 : i32
    %c0_i32_1 = arith.constant 0 : i32
    return %c0_i32, %c0_i32_0 : i32, i32
  }
  func.func @transform_2(%arg0: i32) -> (i32, i32) {
    %c0_i32 = arith.constant 0 : i32
    %c0_i32_0 = arith.constant 0 : i32
    %c0_i32_1 = arith.constant 0 : i32
    return %c0_i32, %c0_i32_0 : i32, i32
  }
  func.func @transform_3(%arg0: i32) -> (i32, i32) {
    %c0_i32 = arith.constant 0 : i32
    %c0_i32_0 = arith.constant 0 : i32
    %c0_i32_1 = arith.constant 0 : i32
    return %c0_i32, %c0_i32_0 : i32, i32
  }
  func.func @transform_4(%arg0: i32) -> (i32, i32) {
    %c0_i32 = arith.constant 0 : i32
    %c0_i32_0 = arith.constant 0 : i32
    %c0_i32_1 = arith.constant 0 : i32
    return %c0_i32, %c0_i32_0 : i32, i32
  }
  func.func @transform_5(%arg0: i32) -> (i32, i32) {
    %c0_i32 = arith.constant 0 : i32
    %c0_i32_0 = arith.constant 0 : i32
    %c0_i32_1 = arith.constant 0 : i32
    return %c0_i32, %c0_i32_0 : i32, i32
  }
  func.func @transform_6(%arg0: i32) -> (i32, i32) {
    %c0_i32 = arith.constant 0 : i32
    %c0_i32_0 = arith.constant 0 : i32
    %c0_i32_1 = arith.constant 0 : i32
    return %c0_i32, %c0_i32_0 : i32, i32
  }
  func.func @transform_7(%arg0: i32) -> (i32, i32) {
    %c0_i32 = arith.constant 0 : i32
    %c0_i32_0 = arith.constant 0 : i32
    return %arg0, %c0_i32 : i32, i32
  }
}

</mosaic_0001>

<llo_original>
// kernel: critic_forward.1
$region0: #{critic_forward.1}
  #allocation0 [shape = 'u32[]', space=smem, size = 0x4, offset = 0x4, fixed_abs, tag = 'smem constant byte address 0x4 - core index']
  #allocation1 [shape = 'u32[144,128]{1,0:T(1,128)}', space=vmem, size = 0x12000, scoped, tag = 'internal scratch']
  #allocation2 [shape = 'f32[1,1]{1,0:T(1,128)S(1)}', space=vmem, size = 0x200, scoped, tag = 'scoped memory for critic_forward.1']
  %s0 = inlined_call_operand.vmem [shape: f32[8,52], index: 0, kind: input, shape index: {}]
  %s1 = inlined_call_operand.hbm [shape: bf16[52,640], index: 1, kind: input, shape index: {}]
  %s2 = inlined_call_operand.vmem [shape: f32[1,640], index: 2, kind: input, shape index: {}]
  %s3 = inlined_call_operand.hbm [shape: bf16[640,640], index: 3, kind: input, shape index: {}]
  %s4 = inlined_call_operand.vmem [shape: f32[1,640], index: 4, kind: input, shape index: {}]
  %s5 = inlined_call_operand.vmem [shape: f32[1,640], index: 5, kind: input, shape index: {}]
  %s6 = inlined_call_operand.<no memory space> [shape: f32[1,1], index: 6, kind: input, shape index: {}]
  %s7 = inlined_call_operand.vmem [shape: f32[8,1], index: 7, kind: output, shape index: {}]
  %s8 = sld [smem:[#allocation0]]
  $region46: #{critic_forward.1} parent=0
    _
  %s10 = ssub.s32 1, %s8
  %s11 = scalar_select 0, %s10, %s8
  %v12 = vstv %s6
  %13 = vst [vmem:[#allocation2] sm:$0x1] %v12
  $region1: #{critic_forward.1} parent=0
    #allocation3 [shape = 'u8[71680]{0}', space=vmem, size = 0x11800, scoped, tag = 'input window, operand 1, single buffered']
    #allocation4 [shape = 's32[1]{0}', space=sflag, size = 0x4, scoped, tag = 'scoped memory for critic_forward.1']
    #allocation5 [shape = 'u8[819200]{0}', space=vmem, size = 0xc8000, scoped, tag = 'input window, operand 3, single buffered']
    #allocation6 [shape = 's32[1]{0}', space=sflag, size = 0x4, scoped, tag = 'scoped memory for critic_forward.1']
    %14 = vsyncpa [#allocation4], 0
    %15 = vsyncpa [#allocation6], 0
    // Predicated region
    $region2: #{critic_forward.1} parent=1 // pred_check
      _
    $region3: #{critic_forward.1} parent=1 // pred_check_branch
      %17 = sbr.rel (0) target = $region5
    $region4: #{critic_forward.1} parent=1 // pred_region
      _
    $region5: #{critic_forward.1} parent=1 // pred_fallthru
      _
    // Predicated region
    $region6: #{critic_forward.1} parent=1 // pred_check
      _
    $region7: #{critic_forward.1} parent=1 // pred_check_branch
      %19 = sbr.rel (0) target = $region9
    $region8: #{critic_forward.1} parent=1 // pred_region
      %s21 = ssub.s32 2240, 2240
      %22 = vsyncadd [#allocation4], %s21
      %s23 = sshll.u32 [#allocation3], 4
      %s24 = int_to_ptr.vmem [resolvable:$true] %s23
      %29 = dma.hbm_to_vmem [thread:$0]  %s1, 2240, %s24, [#allocation4], 320, 320, 20
    $region9: #{critic_forward.1} parent=1 // pred_fallthru
      _
    // Predicated region
    $region10: #{critic_forward.1} parent=1 // pred_check
      _
    $region11: #{critic_forward.1} parent=1 // pred_check_branch
      %31 = sbr.rel (0) target = $region13
    $region12: #{critic_forward.1} parent=1 // pred_region
      _
    $region13: #{critic_forward.1} parent=1 // pred_fallthru
      _
    // Predicated region
    $region14: #{critic_forward.1} parent=1 // pred_check
      _
    $region15: #{critic_forward.1} parent=1 // pred_check_branch
      %33 = sbr.rel (0) target = $region17
    $region16: #{critic_forward.1} parent=1 // pred_region
      %s35 = ssub.s32 25600, 25600
      %36 = vsyncadd [#allocation6], %s35
      %s37 = sshll.u32 [#allocation5], 4
      %s38 = int_to_ptr.vmem [resolvable:$true] %s37
      %43 = dma.hbm_to_vmem [thread:$0]  %s3, 25600, %s38, [#allocation6], 320, 320, 20
    $region17: #{critic_forward.1} parent=1 // pred_fallthru
      _
    // Predicated region
    $region18: #{critic_forward.1} parent=1 // pred_check
      _
    $region19: #{critic_forward.1} parent=1 // pred_check_branch
      %45 = sbr.rel (0) target = $region21
    $region20: #{critic_forward.1} parent=1 // pred_region
      _
    $region21: #{critic_forward.1} parent=1 // pred_fallthru
      _
    // Predicated region
    $region22: #{critic_forward.1} parent=1 // pred_check
      _
    $region23: #{critic_forward.1} parent=1 // pred_check_branch
      %47 = sbr.rel (0) target = $region25
    $region24: #{critic_forward.1} parent=1 // pred_region
      _
    $region25: #{critic_forward.1} parent=1 // pred_fallthru
      _
    // Predicated region
    $region26: #{critic_forward.1} parent=1 // pred_check
      _
    $region27: #{critic_forward.1} parent=1 // pred_check_branch
      %49 = sbr.rel (0) target = $region29
    $region28: #{critic_forward.1} parent=1 // pred_region
      _
    $region29: #{critic_forward.1} parent=1 // pred_fallthru
      _
    // Predicated region
    $region30: #{critic_forward.1} parent=1 // pred_check
      _
    $region31: #{critic_forward.1} parent=1 // pred_check_branch
      %51 = sbr.rel (0) target = $region33
    $region32: #{critic_forward.1} parent=1 // pred_region
      %52 = dma.done [#allocation4], 2240
    $region33: #{critic_forward.1} parent=1 // pred_fallthru
      _
    // Predicated region
    $region34: #{critic_forward.1} parent=1 // pred_check
      _
    $region35: #{critic_forward.1} parent=1 // pred_check_branch
      %54 = sbr.rel (0) target = $region37
    $region36: #{critic_forward.1} parent=1 // pred_region
      %55 = dma.done [#allocation6], 25600
    $region37: #{critic_forward.1} parent=1 // pred_fallthru
      _
    %v57 = vld [vmem:[%s0] sm:$0xff]
    %v58 = vpack.c.bf16 %v57, %v57
    %v59 = vld [vmem:[#allocation3] sm:$0xff]
    %v60 = vld [vmem:[#allocation3 + $0x8] sm:$0xff]
    %v61 = vld [vmem:[#allocation3 + $0x10] sm:$0xf]
    %v62 = vld [vmem:[#allocation3 + $0x14] sm:$0xff]
    %v63 = vld [vmem:[#allocation3 + $0x1c] sm:$0xff]
    %v64 = vld [vmem:[#allocation3 + $0x24] sm:$0xf]
    %v65 = vld [vmem:[#allocation3 + $0x28] sm:$0xff]
    %v66 = vld [vmem:[#allocation3 + $0x30] sm:$0xff]
    %v67 = vld [vmem:[#allocation3 + $0x38] sm:$0xf]
    %v68 = vld [vmem:[#allocation3 + $0x3c] sm:$0xff]
    %v69 = vld [vmem:[#allocation3 + $0x44] sm:$0xff]
    %v70 = vld [vmem:[#allocation3 + $0x4c] sm:$0xf]
    %v71 = vld [vmem:[#allocation3 + $0x50] sm:$0xff]
    %v72 = vld [vmem:[#allocation3 + $0x58] sm:$0xff]
    %v73 = vld [vmem:[#allocation3 + $0x60] sm:$0xf]
    %v74 = vld [vmem:[#allocation3 + $0x64] sm:$0xff]
    %v75 = vld [vmem:[#allocation3 + $0x6c] sm:$0xff]
    %v76 = vld [vmem:[#allocation3 + $0x74] sm:$0xf]
    %v77 = vld [vmem:[#allocation3 + $0x78] sm:$0x33]
    %v78 = vld [vmem:[#allocation3 + $0x80] sm:$0x33]
    %v79 = vld [vmem:[#allocation3 + $0x88] sm:$0x3]
    %v80 = vld [vmem:[%s2] sm:$0x1f]
    %v82 = vlaneseq
    %v83 = vshrl.u32 %v82, 7
    %v84 = vsub.s32 0, %v83
    %v85 = vrot.slane %v80, %v84
    %v86 = vlaneseq
    %v87 = vshrl.u32 %v86, 7
    %v88 = vsub.s32 1, %v87
    %v89 = vrot.slane %v80, %v88
    %v90 = vlaneseq
    %v91 = vshrl.u32 %v90, 7
    %v92 = vsub.s32 2, %v91
    %v93 = vrot.slane %v80, %v92
    %v94 = vlaneseq
    %v95 = vshrl.u32 %v94, 7
    %v96 = vsub.s32 3, %v95
    %v97 = vrot.slane %v80, %v96
    %v98 = vlaneseq
    %v99 = vshrl.u32 %v98, 7
    %v100 = vsub.s32 4, %v99
    %v101 = vrot.slane %v80, %v100
    %v128 = vunpack.c.l.b16 %v59
    %v129 = vunpack.c.h.b16 %v59
    %v130 = vunpack.c.l.b16 %v60
    %v131 = vunpack.c.h.b16 %v60
    %v132 = vunpack.c.l.b16 %v61
    %v133 = vunpack.c.l.b16 %v62
    %v134 = vunpack.c.h.b16 %v62
    %v135 = vunpack.c.l.b16 %v63
    %v136 = vunpack.c.h.b16 %v63
    %v137 = vunpack.c.l.b16 %v64
    %v138 = vunpack.c.l.b16 %v65
    %v139 = vunpack.c.h.b16 %v65
    %v140 = vunpack.c.l.b16 %v66
    %v141 = vunpack.c.h.b16 %v66
    %v142 = vunpack.c.l.b16 %v67
    %v143 = vunpack.c.l.b16 %v68
    %v144 = vunpack.c.h.b16 %v68
    %v145 = vunpack.c.l.b16 %v69
    %v146 = vunpack.c.h.b16 %v69
    %v147 = vunpack.c.l.b16 %v70
    %v148 = vunpack.c.l.b16 %v71
    %v149 = vunpack.c.h.b16 %v71
    %v150 = vunpack.c.l.b16 %v72
    %v151 = vunpack.c.h.b16 %v72
    %v152 = vunpack.c.l.b16 %v73
    %v153 = vunpack.c.l.b16 %v74
    %v154 = vunpack.c.h.b16 %v74
    %v155 = vunpack.c.l.b16 %v75
    %v156 = vunpack.c.h.b16 %v75
    %v157 = vunpack.c.l.b16 %v76
    %v158 = vunpack.c.l.b16 %v77
    %v159 = vunpack.c.h.b16 %v77
    %v160 = vunpack.c.l.b16 %v78
    %v161 = vunpack.c.h.b16 %v78
    %v162 = vunpack.c.l.b16 %v79
    %v163 = vpack.c.b16 %v133, %v128
    %v164 = vpack.c.b16 %v134, %v129
    %v165 = vpack.c.b16 %v135, %v130
    %v166 = vpack.c.b16 %v136, %v131
    %v167 = vpack.c.b16 %v137, %v132
    %v168 = vpack.c.b16 %v143, %v138
    %v169 = vpack.c.b16 %v144, %v139
    %v170 = vpack.c.b16 %v145, %v140
    %v171 = vpack.c.b16 %v146, %v141
    %v172 = vpack.c.b16 %v147, %v142
    %v173 = vpack.c.b16 %v153, %v148
    %v174 = vpack.c.b16 %v154, %v149
    %v175 = vpack.c.b16 %v155, %v150
    %v176 = vpack.c.b16 %v156, %v151
    %v177 = vpack.c.b16 %v157, %v152
    %v178 = vpack.c.b16 %v158, %v158
    %v179 = vpack.c.b16 %v159, %v159
    %v180 = vpack.c.b16 %v160, %v160
    %v181 = vpack.c.b16 %v161, %v161
    %v182 = vpack.c.b16 %v162, %v162
    %vm198 = vcmask 424960
    %v200 = vsel %vm198, %v58, 0
    %vm202 = vcmask 1041408
    %v204 = vsel %vm202, %v178, 0
    %v207 = vsel %vm202, %v179, 0
    %v210 = vsel %vm202, %v180, 0
    %v213 = vsel %vm202, %v181, 0
    %v216 = vsel %vm202, %v182, 0
    %218 = vmatprep.subr.bf16.mxu0 %v164
    %219 = vmatpush1.bf16.msra.mxu0 %v163
    %220 = vmatprep.subr.bf16.mxu0 %v169
    %221 = vmatpush1.bf16.msra.mxu0 %v168
    %222 = vmatprep.subr.bf16.mxu0 %v174
    %223 = vmatpush1.bf16.msra.mxu0 %v173
    %224 = vmatprep.subr.bf16.mxu0 %v207
    %225 = vmatpush1.bf16.msra.mxu0 %v204
    %226 = vmatprep.subr.bf16.mxu0 0
    %227 = vmatpush1.bf16.msra.mxu0 0
    %228 = vmatprep.subr.bf16.mxu0 0
    %229 = vmatpush1.bf16.msra.mxu0 0
    %230 = vmatprep.subr.bf16.mxu0 0
    %231 = vmatpush1.bf16.msra.mxu0 0
    %232 = vmatprep.subr.bf16.mxu0 0
    %233 = vmatpush1.bf16.msra.mxu0 0
    %234 = vmatprep.subr.bf16.mxu0 0
    %235 = vmatpush1.bf16.msra.mxu0 0
    %236 = vmatprep.subr.bf16.mxu0 0
    %237 = vmatpush1.bf16.msra.mxu0 0
    %238 = vmatprep.subr.bf16.mxu0 0
    %239 = vmatpush1.bf16.msra.mxu0 0
    %240 = vmatprep.subr.bf16.mxu0 0
    %241 = vmatpush1.bf16.msra.mxu0 0
    %242 = vmatprep.subr.bf16.mxu0 0
    %243 = vmatpush1.bf16.msra.mxu0 0
    %244 = vmatprep.subr.bf16.mxu0 0
    %245 = vmatpush1.bf16.msra.mxu0 0
    %246 = vmatprep.subr.bf16.mxu0 0
    %247 = vmatpush1.bf16.msra.mxu0 0
    %248 = vmatprep.subr.bf16.mxu0 0
    %249 = vmatpush1.bf16.msra.mxu0 0
    %250 = vmatprep.mubr.bf16.mxu0 0
    %251 = vmatmul.mubr.bf16.gmra.mrb[0].mxu0 %v200
    %v252 = vpop.f32.mrb[0].mxu0
    %v253 = vadd.f32 %v85, %v252
    %v254 = vpop.f32.mrb[0].mxu0
    %v255 = vadd.f32 %v89, %v254
    %v256 = vpop.f32.mrb[0].mxu0
    %v257 = vpop.f32.mrb[0].mxu0
    %258 = vdwg.mxu0
    %259 = vmatprep.subr.bf16.mxu0 %v166
    %260 = vmatpush1.bf16.msra.mxu0 %v165
    %261 = vmatprep.subr.bf16.mxu0 %v171
    %262 = vmatpush1.bf16.msra.mxu0 %v170
    %263 = vmatprep.subr.bf16.mxu0 %v176
    %264 = vmatpush1.bf16.msra.mxu0 %v175
    %265 = vmatprep.subr.bf16.mxu0 %v213
    %266 = vmatpush1.bf16.msra.mxu0 %v210
    %267 = vmatprep.subr.bf16.mxu0 0
    %268 = vmatpush1.bf16.msra.mxu0 0
    %269 = vmatprep.subr.bf16.mxu0 0
    %270 = vmatpush1.bf16.msra.mxu0 0
    %271 = vmatprep.subr.bf16.mxu0 0
    %272 = vmatpush1.bf16.msra.mxu0 0
    %273 = vmatprep.subr.bf16.mxu0 0
    %274 = vmatpush1.bf16.msra.mxu0 0
    %275 = vmatprep.subr.bf16.mxu0 0
    %276 = vmatpush1.bf16.msra.mxu0 0
    %277 = vmatprep.subr.bf16.mxu0 0
    %278 = vmatpush1.bf16.msra.mxu0 0
    %279 = vmatprep.subr.bf16.mxu0 0
    %280 = vmatpush1.bf16.msra.mxu0 0
    %281 = vmatprep.subr.bf16.mxu0 0
    %282 = vmatpush1.bf16.msra.mxu0 0
    %283 = vmatprep.subr.bf16.mxu0 0
    %284 = vmatpush1.bf16.msra.mxu0 0
    %285 = vmatprep.subr.bf16.mxu0 0
    %286 = vmatpush1.bf16.msra.mxu0 0
    %287 = vmatprep.subr.bf16.mxu0 0
    %288 = vmatpush1.bf16.msra.mxu0 0
    %289 = vmatprep.subr.bf16.mxu0 0
    %290 = vmatpush1.bf16.msra.mxu0 0
    %291 = vmatprep.mubr.bf16.mxu0 0
    %292 = vmatmul.mubr.bf16.gmra.mrb[0].mxu0 %v200
    %v293 = vpop.f32.mrb[0].mxu0
    %v294 = vadd.f32 %v93, %v293
    %v295 = vpop.f32.mrb[0].mxu0
    %v296 = vadd.f32 %v97, %v295
    %v297 = vpop.f32.mrb[0].mxu0
    %v298 = vpop.f32.mrb[0].mxu0
    %299 = vdwg.mxu0
    %300 = vmatprep.subr.bf16.mxu0 0
    %301 = vmatpush1.bf16.msra.mxu0 %v167
    %302 = vmatprep.subr.bf16.mxu0 0
    %303 = vmatpush1.bf16.msra.mxu0 %v172
    %304 = vmatprep.subr.bf16.mxu0 0
    %305 = vmatpush1.bf16.msra.mxu0 %v177
    %306 = vmatprep.subr.bf16.mxu0 0
    %307 = vmatpush1.bf16.msra.mxu0 %v216
    %308 = vmatprep.subr.bf16.mxu0 0
    %309 = vmatpush1.bf16.msra.mxu0 0
    %310 = vmatprep.subr.bf16.mxu0 0
    %311 = vmatpush1.bf16.msra.mxu0 0
    %312 = vmatprep.subr.bf16.mxu0 0
    %313 = vmatpush1.bf16.msra.mxu0 0
    %314 = vmatprep.subr.bf16.mxu0 0
    %315 = vmatpush1.bf16.msra.mxu0 0
    %316 = vmatprep.subr.bf16.mxu0 0
    %317 = vmatpush1.bf16.msra.mxu0 0
    %318 = vmatprep.subr.bf16.mxu0 0
    %319 = vmatpush1.bf16.msra.mxu0 0
    %320 = vmatprep.subr.bf16.mxu0 0
    %321 = vmatpush1.bf16.msra.mxu0 0
    %322 = vmatprep.subr.bf16.mxu0 0
    %323 = vmatpush1.bf16.msra.mxu0 0
    %324 = vmatprep.subr.bf16.mxu0 0
    %325 = vmatpush1.bf16.msra.mxu0 0
    %326 = vmatprep.subr.bf16.mxu0 0
    %327 = vmatpush1.bf16.msra.mxu0 0
    %328 = vmatprep.subr.bf16.mxu0 0
    %329 = vmatpush1.bf16.msra.mxu0 0
    %330 = vmatprep.subr.bf16.mxu0 0
    %331 = vmatpush1.bf16.msra.mxu0 0
    %332 = vmatprep.mubr.bf16.mxu0 0
    %333 = vmatmul.mubr.bf16.gmra.mrb[0].mxu0 %v200
    %v334 = vpop.f32.mrb[0].mxu0
    %v335 = vadd.f32 %v101, %v334
    %v336 = vpop.f32.mrb[0].mxu0
    %v337 = vpop.f32.mrb[0].mxu0
    %v338 = vpop.f32.mrb[0].mxu0
    %339 = vdwg.mxu0
    %v340 = vmax.f32 %v253, 0.0
    %v341 = vmax.f32 %v255, 0.0
    %v342 = vmax.f32 %v294, 0.0
    %v343 = vmax.f32 %v296, 0.0
    %v344 = vmax.f32 %v335, 0.0
    %v345 = vpack.c.bf16 %v340, %v340
    %v346 = vpack.c.bf16 %v341, %v341
    %v347 = vpack.c.bf16 %v342, %v342
    %v348 = vpack.c.bf16 %v343, %v343
    %v349 = vpack.c.bf16 %v344, %v344
    %v350 = vld [vmem:[#allocation5] sm:$0xff]
    %v351 = vld [vmem:[#allocation5 + $0x8] sm:$0xff]
    %v352 = vld [vmem:[#allocation5 + $0x10] sm:$0xf]
    %v353 = vld [vmem:[#allocation5 + $0x14] sm:$0xff]
    %v354 = vld [vmem:[#allocation5 + $0x1c] sm:$0xff]
    %v355 = vld [vmem:[#allocation5 + $0x24] sm:$0xf]
    %v356 = vld [vmem:[#allocation5 + $0x28] sm:$0xff]
    %v357 = vld [vmem:[#allocation5 + $0x30] sm:$0xff]
    %v358 = vld [vmem:[#allocation5 + $0x38] sm:$0xf]
    %v359 = vld [vmem:[#allocation5 + $0x3c] sm:$0xff]
    %v360 = vld [vmem:[#allocation5 + $0x44] sm:$0xff]
    %v361 = vld [vmem:[#allocation5 + $0x4c] sm:$0xf]
    %v362 = vld [vmem:[#allocation5 + $0x50] sm:$0xff]
    %v363 = vld [vmem:[#allocation5 + $0x58] sm:$0xff]
    %v364 = vld [vmem:[#allocation5 + $0x60] sm:$0xf]
    %v365 = vld [vmem:[#allocation5 + $0x64] sm:$0xff]
    %v366 = vld [vmem:[#allocation5 + $0x6c] sm:$0xff]
    %v367 = vld [vmem:[#allocation5 + $0x74] sm:$0xf]
    %v368 = vld [vmem:[#allocation5 + $0x78] sm:$0xff]
    %v369 = vld [vmem:[#allocation5 + $0x80] sm:$0xff]
    %v370 = vld [vmem:[#allocation5 + $0x88] sm:$0xf]
    %v371 = vld [vmem:[#allocation5 + $0x8c] sm:$0xff]
    %v372 = vld [vmem:[#allocation5 + $0x94] sm:$0xff]
    %v373 = vld [vmem:[#allocation5 + $0x9c] sm:$0xf]
    %v374 = vld [vmem:[#allocation5 + $0xa0] sm:$0xff]
    %v375 = vld [vmem:[#allocation5 + $0xa8] sm:$0xff]
    %v376 = vld [vmem:[#allocation5 + $0xb0] sm:$0xf]
    %v377 = vld [vmem:[#allocation5 + $0xb4] sm:$0xff]
    %v378 = vld [vmem:[#allocation5 + $0xbc] sm:$0xff]
    %v379 = vld [vmem:[#allocation5 + $0xc4] sm:$0xf]
    %v380 = vld [vmem:[#allocation5 + $0xc8] sm:$0xff]
    %v381 = vld [vmem:[#allocation5 + $0xd0] sm:$0xff]
    %v382 = vld [vmem:[#allocation5 + $0xd8] sm:$0xf]
    %v383 = vld [vmem:[#allocation5 + $0xdc] sm:$0xff]
    %v384 = vld [vmem:[#allocation5 + $0xe4] sm:$0xff]
    %v385 = vld [vmem:[#allocation5 + $0xec] sm:$0xf]
    %v386 = vld [vmem:[#allocation5 + $0xf0] sm:$0xff]
    %v387 = vld [vmem:[#allocation5 + $0xf8] sm:$0xff]
    %v388 = vld [vmem:[#allocation5 + $0x100] sm:$0xf]
    %v389 = vld [vmem:[#allocation5 + $0x104] sm:$0xff]
    %v390 = vld [vmem:[#allocation5 + $0x10c] sm:$0xff]
    %v391 = vld [vmem:[#allocation5 + $0x114] sm:$0xf]
    %v392 = vld [vmem:[#allocation5 + $0x118] sm:$0xff]
    %v393 = vld [vmem:[#allocation5 + $0x120] sm:$0xff]
    %v394 = vld [vmem:[#allocation5 + $0x128] sm:$0xf]
    %v395 = vld [vmem:[#allocation5 + $0x12c] sm:$0xff]
    %v396 = vld [vmem:[#allocation5 + $0x134] sm:$0xff]
    %v397 = vld [vmem:[#allocation5 + $0x13c] sm:$0xf]
    %v398 = vld [vmem:[#allocation5 + $0x140] sm:$0xff]
    %v399 = vld [vmem:[#allocation5 + $0x148] sm:$0xff]
    %v400 = vld [vmem:[#allocation5 + $0x150] sm:$0xf]
    %v401 = vld [vmem:[#allocation5 + $0x154] sm:$0xff]
    %v402 = vld [vmem:[#allocation5 + $0x15c] sm:$0xff]
    %v403 = vld [vmem:[#allocation5 + $0x164] sm:$0xf]
    %v404 = vld [vmem:[#allocation5 + $0x168] sm:$0xff]
    %v405 = vld [vmem:[#allocation5 + $0x170] sm:$0xff]
    %v406 = vld [vmem:[#allocation5 + $0x178] sm:$0xf]
    %v407 = vld [vmem:[#allocation5 + $0x17c] sm:$0xff]
    %v408 = vld [vmem:[#allocation5 + $0x184] sm:$0xff]
    %v409 = vld [vmem:[#allocation5 + $0x18c] sm:$0xf]
    %v410 = vld [vmem:[#allocation5 + $0x190] sm:$0xff]
    %v411 = vld [vmem:[#allocation5 + $0x198] sm:$0xff]
    %v412 = vld [vmem:[#allocation5 + $0x1a0] sm:$0xf]
    %v413 = vld [vmem:[#allocation5 + $0x1a4] sm:$0xff]
    %v414 = vld [vmem:[#allocation5 + $0x1ac] sm:$0xff]
    %v415 = vld [vmem:[#allocation5 + $0x1b4] sm:$0xf]
    %v416 = vld [vmem:[#allocation5 + $0x1b8] sm:$0xff]
    %v417 = vld [vmem:[#allocation5 + $0x1c0] sm:$0xff]
    %v418 = vld [vmem:[#allocation5 + $0x1c8] sm:$0xf]
    %v419 = vld [vmem:[#allocation5 + $0x1cc] sm:$0xff]
    %v420 = vld [vmem:[#allocation5 + $0x1d4] sm:$0xff]
    %v421 = vld [vmem:[#allocation5 + $0x1dc] sm:$0xf]
    %v422 = vld [vmem:[#allocation5 + $0x1e0] sm:$0xff]
    %v423 = vld [vmem:[#allocation5 + $0x1e8] sm:$0xff]
    %v424 = vld [vmem:[#allocation5 + $0x1f0] sm:$0xf]
    %v425 = vld [vmem:[#allocation5 + $0x1f4] sm:$0xff]
    %v426 = vld [vmem:[#allocation5 + $0x1fc] sm:$0xff]
    %v427 = vld [vmem:[#allocation5 + $0x204] sm:$0xf]
    %v428 = vld [vmem:[#allocation5 + $0x208] sm:$0xff]
    %v429 = vld [vmem:[#allocation5 + $0x210] sm:$0xff]
    %v430 = vld [vmem:[#allocation5 + $0x218] sm:$0xf]
    %v431 = vld [vmem:[#allocation5 + $0x21c] sm:$0xff]
    %v432 = vld [vmem:[#allocation5 + $0x224] sm:$0xff]
    %v433 = vld [vmem:[#allocation5 + $0x22c] sm:$0xf]
    %v434 = vld [vmem:[#allocation5 + $0x230] sm:$0xff]
    %v435 = vld [vmem:[#allocation5 + $0x238] sm:$0xff]
    %v436 = vld [vmem:[#allocation5 + $0x240] sm:$0xf]
    %v437 = vld [vmem:[#allocation5 + $0x244] sm:$0xff]
    %v438 = vld [vmem:[#allocation5 + $0x24c] sm:$0xff]
    %v439 = vld [vmem:[#allocation5 + $0x254] sm:$0xf]
    %v440 = vld [vmem:[#allocation5 + $0x258] sm:$0xff]
    %v441 = vld [vmem:[#allocation5 + $0x260] sm:$0xff]
    %v442 = vld [vmem:[#allocation5 + $0x268] sm:$0xf]
    %v443 = vld [vmem:[#allocation5 + $0x26c] sm:$0xff]
    %v444 = vld [vmem:[#allocation5 + $0x274] sm:$0xff]
    %v445 = vld [vmem:[#allocation5 + $0x27c] sm:$0xf]
    %v446 = vld [vmem:[#allocation5 + $0x280] sm:$0xff]
    %v447 = vld [vmem:[#allocation5 + $0x288] sm:$0xff]
    %v448 = vld [vmem:[#allocation5 + $0x290] sm:$0xf]
    %v449 = vld [vmem:[#allocation5 + $0x294] sm:$0xff]
    %v450 = vld [vmem:[#allocation5 + $0x29c] sm:$0xff]
    %v451 = vld [vmem:[#allocation5 + $0x2a4] sm:$0xf]
    %v452 = vld [vmem:[#allocation5 + $0x2a8] sm:$0xff]
    %v453 = vld [vmem:[#allocation5 + $0x2b0] sm:$0xff]
    %v454 = vld [vmem:[#allocation5 + $0x2b8] sm:$0xf]
    %v455 = vld [vmem:[#allocation5 + $0x2bc] sm:$0xff]
    %v456 = vld [vmem:[#allocation5 + $0x2c4] sm:$0xff]
    %v457 = vld [vmem:[#allocation5 + $0x2cc] sm:$0xf]
    %v458 = vld [vmem:[#allocation5 + $0x2d0] sm:$0xff]
    %v459 = vld [vmem:[#allocation5 + $0x2d8] sm:$0xff]
    %v460 = vld [vmem:[#allocation5 + $0x2e0] sm:$0xf]
    %v461 = vld [vmem:[#allocation5 + $0x2e4] sm:$0xff]
    %v462 = vld [vmem:[#allocation5 + $0x2ec] sm:$0xff]
    %v463 = vld [vmem:[#allocation5 + $0x2f4] sm:$0xf]
    %v464 = vld [vmem:[#allocation5 + $0x2f8] sm:$0xff]
    %v465 = vld [vmem:[#allocation5 + $0x300] sm:$0xff]
    %v466 = vld [vmem:[#allocation5 + $0x308] sm:$0xf]
    %v467 = vld [vmem:[#allocation5 + $0x30c] sm:$0xff]
    %v468 = vld [vmem:[#allocation5 + $0x314] sm:$0xff]
    %v469 = vld [vmem:[#allocation5 + $0x31c] sm:$0xf]
    %v470 = vld [vmem:[#allocation5 + $0x320] sm:$0xff]
    %v471 = vld [vmem:[#allocation5 + $0x328] sm:$0xff]
    %v472 = vld [vmem:[#allocation5 + $0x330] sm:$0xf]
    %v473 = vld [vmem:[#allocation5 + $0x334] sm:$0xff]
    %v474 = vld [vmem:[#allocation5 + $0x33c] sm:$0xff]
    %v475 = vld [vmem:[#allocation5 + $0x344] sm:$0xf]
    %v476 = vld [vmem:[#allocation5 + $0x348] sm:$0xff]
    %v477 = vld [vmem:[#allocation5 + $0x350] sm:$0xff]
    %v478 = vld [vmem:[#allocation5 + $0x358] sm:$0xf]
    %v479 = vld [vmem:[#allocation5 + $0x35c] sm:$0xff]
    %v480 = vld [vmem:[#allocation5 + $0x364] sm:$0xff]
    %v481 = vld [vmem:[#allocation5 + $0x36c] sm:$0xf]
    %v482 = vld [vmem:[#allocation5 + $0x370] sm:$0xff]
    %v483 = vld [vmem:[#allocation5 + $0x378] sm:$0xff]
    %v484 = vld [vmem:[#allocation5 + $0x380] sm:$0xf]
    %v485 = vld [vmem:[#allocation5 + $0x384] sm:$0xff]
    %v486 = vld [vmem:[#allocation5 + $0x38c] sm:$0xff]
    %v487 = vld [vmem:[#allocation5 + $0x394] sm:$0xf]
    %v488 = vld [vmem:[#allocation5 + $0x398] sm:$0xff]
    %v489 = vld [vmem:[#allocation5 + $0x3a0] sm:$0xff]
    %v490 = vld [vmem:[#allocation5 + $0x3a8] sm:$0xf]
    %v491 = vld [vmem:[#allocation5 + $0x3ac] sm:$0xff]
    %v492 = vld [vmem:[#allocation5 + $0x3b4] sm:$0xff]
    %v493 = vld [vmem:[#allocation5 + $0x3bc] sm:$0xf]
    %v494 = vld [vmem:[#allocation5 + $0x3c0] sm:$0xff]
    %v495 = vld [vmem:[#allocation5 + $0x3c8] sm:$0xff]
    %v496 = vld [vmem:[#allocation5 + $0x3d0] sm:$0xf]
    %v497 = vld [vmem:[#allocation5 + $0x3d4] sm:$0xff]
    %v498 = vld [vmem:[#allocation5 + $0x3dc] sm:$0xff]
    %v499 = vld [vmem:[#allocation5 + $0x3e4] sm:$0xf]
    %v500 = vld [vmem:[#allocation5 + $0x3e8] sm:$0xff]
    %v501 = vld [vmem:[#allocation5 + $0x3f0] sm:$0xff]
    %v502 = vld [vmem:[#allocation5 + $0x3f8] sm:$0xf]
    %v503 = vld [vmem:[#allocation5 + $0x3fc] sm:$0xff]
    %v504 = vld [vmem:[#allocation5 + $0x404] sm:$0xff]
    %v505 = vld [vmem:[#allocation5 + $0x40c] sm:$0xf]
    %v506 = vld [vmem:[#allocation5 + $0x410] sm:$0xff]
    %v507 = vld [vmem:[#allocation5 + $0x418] sm:$0xff]
    %v508 = vld [vmem:[#allocation5 + $0x420] sm:$0xf]
    %v509 = vld [vmem:[#allocation5 + $0x424] sm:$0xff]
    %v510 = vld [vmem:[#allocation5 + $0x42c] sm:$0xff]
    %v511 = vld [vmem:[#allocation5 + $0x434] sm:$0xf]
    %v512 = vld [vmem:[#allocation5 + $0x438] sm:$0xff]
    %v513 = vld [vmem:[#allocation5 + $0x440] sm:$0xff]
    %v514 = vld [vmem:[#allocation5 + $0x448] sm:$0xf]
    %v515 = vld [vmem:[#allocation5 + $0x44c] sm:$0xff]
    %v516 = vld [vmem:[#allocation5 + $0x454] sm:$0xff]
    %v517 = vld [vmem:[#allocation5 + $0x45c] sm:$0xf]
    %v518 = vld [vmem:[#allocation5 + $0x460] sm:$0xff]
    %v519 = vld [vmem:[#allocation5 + $0x468] sm:$0xff]
    %v520 = vld [vmem:[#allocation5 + $0x470] sm:$0xf]
    %v521 = vld [vmem:[#allocation5 + $0x474] sm:$0xff]
    %v522 = vld [vmem:[#allocation5 + $0x47c] sm:$0xff]
    %v523 = vld [vmem:[#allocation5 + $0x484] sm:$0xf]
    %v524 = vld [vmem:[#allocation5 + $0x488] sm:$0xff]
    %v525 = vld [vmem:[#allocation5 + $0x490] sm:$0xff]
    %v526 = vld [vmem:[#allocation5 + $0x498] sm:$0xf]
    %v527 = vld [vmem:[#allocation5 + $0x49c] sm:$0xff]
    %v528 = vld [vmem:[#allocation5 + $0x4a4] sm:$0xff]
    %v529 = vld [vmem:[#allocation5 + $0x4ac] sm:$0xf]
    %v530 = vld [vmem:[#allocation5 + $0x4b0] sm:$0xff]
    %v531 = vld [vmem:[#allocation5 + $0x4b8] sm:$0xff]
    %v532 = vld [vmem:[#allocation5 + $0x4c0] sm:$0xf]
    %v533 = vld [vmem:[#allocation5 + $0x4c4] sm:$0xff]
    %v534 = vld [vmem:[#allocation5 + $0x4cc] sm:$0xff]
    %v535 = vld [vmem:[#allocation5 + $0x4d4] sm:$0xf]
    %v536 = vld [vmem:[#allocation5 + $0x4d8] sm:$0xff]
    %v537 = vld [vmem:[#allocation5 + $0x4e0] sm:$0xff]
    %v538 = vld [vmem:[#allocation5 + $0x4e8] sm:$0xf]
    %v539 = vld [vmem:[#allocation5 + $0x4ec] sm:$0xff]
    %v540 = vld [vmem:[#allocation5 + $0x4f4] sm:$0xff]
    %v541 = vld [vmem:[#allocation5 + $0x4fc] sm:$0xf]
    %v542 = vld [vmem:[#allocation5 + $0x500] sm:$0xff]
    %v543 = vld [vmem:[#allocation5 + $0x508] sm:$0xff]
    %v544 = vld [vmem:[#allocation5 + $0x510] sm:$0xf]
    %v545 = vld [vmem:[#allocation5 + $0x514] sm:$0xff]
    %v546 = vld [vmem:[#allocation5 + $0x51c] sm:$0xff]
    %v547 = vld [vmem:[#allocation5 + $0x524] sm:$0xf]
    %v548 = vld [vmem:[#allocation5 + $0x528] sm:$0xff]
    %v549 = vld [vmem:[#allocation5 + $0x530] sm:$0xff]
    %v550 = vld [vmem:[#allocation5 + $0x538] sm:$0xf]
    %v551 = vld [vmem:[#allocation5 + $0x53c] sm:$0xff]
    %v552 = vld [vmem:[#allocation5 + $0x544] sm:$0xff]
    %v553 = vld [vmem:[#allocation5 + $0x54c] sm:$0xf]
    %v554 = vld [vmem:[#allocation5 + $0x550] sm:$0xff]
    %v555 = vld [vmem:[#allocation5 + $0x558] sm:$0xff]
    %v556 = vld [vmem:[#allocation5 + $0x560] sm:$0xf]
    %v557 = vld [vmem:[#allocation5 + $0x564] sm:$0xff]
    %v558 = vld [vmem:[#allocation5 + $0x56c] sm:$0xff]
    %v559 = vld [vmem:[#allocation5 + $0x574] sm:$0xf]
    %v560 = vld [vmem:[#allocation5 + $0x578] sm:$0xff]
    %v561 = vld [vmem:[#allocation5 + $0x580] sm:$0xff]
    %v562 = vld [vmem:[#allocation5 + $0x588] sm:$0xf]
    %v563 = vld [vmem:[#allocation5 + $0x58c] sm:$0xff]
    %v564 = vld [vmem:[#allocation5 + $0x594] sm:$0xff]
    %v565 = vld [vmem:[#allocation5 + $0x59c] sm:$0xf]
    %v566 = vld [vmem:[#allocation5 + $0x5a0] sm:$0xff]
    %v567 = vld [vmem:[#allocation5 + $0x5a8] sm:$0xff]
    %v568 = vld [vmem:[#allocation5 + $0x5b0] sm:$0xf]
    %v569 = vld [vmem:[#allocation5 + $0x5b4] sm:$0xff]
    %v570 = vld [vmem:[#allocation5 + $0x5bc] sm:$0xff]
    %v571 = vld [vmem:[#allocation5 + $0x5c4] sm:$0xf]
    %v572 = vld [vmem:[#allocation5 + $0x5c8] sm:$0xff]
    %v573 = vld [vmem:[#allocation5 + $0x5d0] sm:$0xff]
    %v574 = vld [vmem:[#allocation5 + $0x5d8] sm:$0xf]
    %v575 = vld [vmem:[#allocation5 + $0x5dc] sm:$0xff]
    %v576 = vld [vmem:[#allocation5 + $0x5e4] sm:$0xff]
    %v577 = vld [vmem:[#allocation5 + $0x5ec] sm:$0xf]
    %v578 = vld [vmem:[#allocation5 + $0x5f0] sm:$0xff]
    %v579 = vld [vmem:[#allocation5 + $0x5f8] sm:$0xff]
    %v580 = vld [vmem:[#allocation5 + $0x600] sm:$0xf]
    %v581 = vld [vmem:[#allocation5 + $0x604] sm:$0xff]
    %v582 = vld [vmem:[#allocation5 + $0x60c] sm:$0xff]
    %v583 = vld [vmem:[#allocation5 + $0x614] sm:$0xf]
    %v584 = vld [vmem:[#allocation5 + $0x618] sm:$0xff]
    %v585 = vld [vmem:[#allocation5 + $0x620] sm:$0xff]
    %v586 = vld [vmem:[#allocation5 + $0x628] sm:$0xf]
    %v587 = vld [vmem:[#allocation5 + $0x62c] sm:$0xff]
    %v588 = vld [vmem:[#allocation5 + $0x634] sm:$0xff]
    %v589 = vld [vmem:[#allocation5 + $0x63c] sm:$0xf]
    %v590 = vld [vmem:[%s4] sm:$0x1f]
    %v592 = vlaneseq
    %v593 = vshrl.u32 %v592, 7
    %v594 = vsub.s32 0, %v593
    %v595 = vrot.slane %v590, %v594
    %v596 = vlaneseq
    %v597 = vshrl.u32 %v596, 7
    %v598 = vsub.s32 1, %v597
    %v599 = vrot.slane %v590, %v598
    %v600 = vlaneseq
    %v601 = vshrl.u32 %v600, 7
    %v602 = vsub.s32 2, %v601
    %v603 = vrot.slane %v590, %v602
    %v604 = vlaneseq
    %v605 = vshrl.u32 %v604, 7
    %v606 = vsub.s32 3, %v605
    %v607 = vrot.slane %v590, %v606
    %v608 = vlaneseq
    %v609 = vshrl.u32 %v608, 7
    %v610 = vsub.s32 4, %v609
    %v611 = vrot.slane %v590, %v610
    %v857 = vunpack.c.l.b16 %v350
    %v858 = vunpack.c.h.b16 %v350
    %v859 = vunpack.c.l.b16 %v351
    %v860 = vunpack.c.h.b16 %v351
    %v861 = vunpack.c.l.b16 %v352
    %v862 = vunpack.c.l.b16 %v353
    %v863 = vunpack.c.h.b16 %v353
    %v864 = vunpack.c.l.b16 %v354
    %v865 = vunpack.c.h.b16 %v354
    %v866 = vunpack.c.l.b16 %v355
    %v867 = vunpack.c.l.b16 %v356
    %v868 = vunpack.c.h.b16 %v356
    %v869 = vunpack.c.l.b16 %v357
    %v870 = vunpack.c.h.b16 %v357
    %v871 = vunpack.c.l.b16 %v358
    %v872 = vunpack.c.l.b16 %v359
    %v873 = vunpack.c.h.b16 %v359
    %v874 = vunpack.c.l.b16 %v360
    %v875 = vunpack.c.h.b16 %v360
    %v876 = vunpack.c.l.b16 %v361
    %v877 = vunpack.c.l.b16 %v362
    %v878 = vunpack.c.h.b16 %v362
    %v879 = vunpack.c.l.b16 %v363
    %v880 = vunpack.c.h.b16 %v363
    %v881 = vunpack.c.l.b16 %v364
    %v882 = vunpack.c.l.b16 %v365
    %v883 = vunpack.c.h.b16 %v365
    %v884 = vunpack.c.l.b16 %v366
    %v885 = vunpack.c.h.b16 %v366
    %v886 = vunpack.c.l.b16 %v367
    %v887 = vunpack.c.l.b16 %v368
    %v888 = vunpack.c.h.b16 %v368
    %v889 = vunpack.c.l.b16 %v369
    %v890 = vunpack.c.h.b16 %v369
    %v891 = vunpack.c.l.b16 %v370
    %v892 = vunpack.c.l.b16 %v371
    %v893 = vunpack.c.h.b16 %v371
    %v894 = vunpack.c.l.b16 %v372
    %v895 = vunpack.c.h.b16 %v372
    %v896 = vunpack.c.l.b16 %v373
    %v897 = vunpack.c.l.b16 %v374
    %v898 = vunpack.c.h.b16 %v374
    %v899 = vunpack.c.l.b16 %v375
    %v900 = vunpack.c.h.b16 %v375
    %v901 = vunpack.c.l.b16 %v376
    %v902 = vunpack.c.l.b16 %v377
    %v903 = vunpack.c.h.b16 %v377
    %v904 = vunpack.c.l.b16 %v378
    %v905 = vunpack.c.h.b16 %v378
    %v906 = vunpack.c.l.b16 %v379
    %v907 = vunpack.c.l.b16 %v380
    %v908 = vunpack.c.h.b16 %v380
    %v909 = vunpack.c.l.b16 %v381
    %v910 = vunpack.c.h.b16 %v381
    %v911 = vunpack.c.l.b16 %v382
    %v912 = vunpack.c.l.b16 %v383
    %v913 = vunpack.c.h.b16 %v383
    %v914 = vunpack.c.l.b16 %v384
    %v915 = vunpack.c.h.b16 %v384
    %v916 = vunpack.c.l.b16 %v385
    %v917 = vunpack.c.l.b16 %v386
    %v918 = vunpack.c.h.b16 %v386
    %v919 = vunpack.c.l.b16 %v387
    %v920 = vunpack.c.h.b16 %v387
    %v921 = vunpack.c.l.b16 %v388
    %v922 = vunpack.c.l.b16 %v389
    %v923 = vunpack.c.h.b16 %v389
    %v924 = vunpack.c.l.b16 %v390
    %v925 = vunpack.c.h.b16 %v390
    %v926 = vunpack.c.l.b16 %v391
    %v927 = vunpack.c.l.b16 %v392
    %v928 = vunpack.c.h.b16 %v392
    %v929 = vunpack.c.l.b16 %v393
    %v930 = vunpack.c.h.b16 %v393
    %v931 = vunpack.c.l.b16 %v394
    %v932 = vunpack.c.l.b16 %v395
    %v933 = vunpack.c.h.b16 %v395
    %v934 = vunpack.c.l.b16 %v396
    %v935 = vunpack.c.h.b16 %v396
    %v936 = vunpack.c.l.b16 %v397
    %v937 = vunpack.c.l.b16 %v398
    %v938 = vunpack.c.h.b16 %v398
    %v939 = vunpack.c.l.b16 %v399
    %v940 = vunpack.c.h.b16 %v399
    %v941 = vunpack.c.l.b16 %v400
    %v942 = vunpack.c.l.b16 %v401
    %v943 = vunpack.c.h.b16 %v401
    %v944 = vunpack.c.l.b16 %v402
    %v945 = vunpack.c.h.b16 %v402
    %v946 = vunpack.c.l.b16 %v403
    %v947 = vunpack.c.l.b16 %v404
    %v948 = vunpack.c.h.b16 %v404
    %v949 = vunpack.c.l.b16 %v405
    %v950 = vunpack.c.h.b16 %v405
    %v951 = vunpack.c.l.b16 %v406
    %v952 = vunpack.c.l.b16 %v407
    %v953 = vunpack.c.h.b16 %v407
    %v954 = vunpack.c.l.b16 %v408
    %v955 = vunpack.c.h.b16 %v408
    %v956 = vunpack.c.l.b16 %v409
    %v957 = vunpack.c.l.b16 %v410
    %v958 = vunpack.c.h.b16 %v410
    %v959 = vunpack.c.l.b16 %v411
    %v960 = vunpack.c.h.b16 %v411
    %v961 = vunpack.c.l.b16 %v412
    %v962 = vunpack.c.l.b16 %v413
    %v963 = vunpack.c.h.b16 %v413
    %v964 = vunpack.c.l.b16 %v414
    %v965 = vunpack.c.h.b16 %v414
    %v966 = vunpack.c.l.b16 %v415
    %v967 = vunpack.c.l.b16 %v416
    %v968 = vunpack.c.h.b16 %v416
    %v969 = vunpack.c.l.b16 %v417
    %v970 = vunpack.c.h.b16 %v417
    %v971 = vunpack.c.l.b16 %v418
    %v972 = vunpack.c.l.b16 %v419
    %v973 = vunpack.c.h.b16 %v419
    %v974 = vunpack.c.l.b16 %v420
    %v975 = vunpack.c.h.b16 %v420
    %v976 = vunpack.c.l.b16 %v421
    %v977 = vunpack.c.l.b16 %v422
    %v978 = vunpack.c.h.b16 %v422
    %v979 = vunpack.c.l.b16 %v423
    %v980 = vunpack.c.h.b16 %v423
    %v981 = vunpack.c.l.b16 %v424
    %v982 = vunpack.c.l.b16 %v425
    %v983 = vunpack.c.h.b16 %v425
    %v984 = vunpack.c.l.b16 %v426
    %v985 = vunpack.c.h.b16 %v426
    %v986 = vunpack.c.l.b16 %v427
    %v987 = vunpack.c.l.b16 %v428
    %v988 = vunpack.c.h.b16 %v428
    %v989 = vunpack.c.l.b16 %v429
    %v990 = vunpack.c.h.b16 %v429
    %v991 = vunpack.c.l.b16 %v430
    %v992 = vunpack.c.l.b16 %v431
    %v993 = vunpack.c.h.b16 %v431
    %v994 = vunpack.c.l.b16 %v432
    %v995 = vunpack.c.h.b16 %v432
    %v996 = vunpack.c.l.b16 %v433
    %v997 = vunpack.c.l.b16 %v434
    %v998 = vunpack.c.h.b16 %v434
    %v999 = vunpack.c.l.b16 %v435
    %v1000 = vunpack.c.h.b16 %v435
    %v1001 = vunpack.c.l.b16 %v436
    %v1002 = vunpack.c.l.b16 %v437
    %v1003 = vunpack.c.h.b16 %v437
    %v1004 = vunpack.c.l.b16 %v438
    %v1005 = vunpack.c.h.b16 %v438
    %v1006 = vunpack.c.l.b16 %v439
    %v1007 = vunpack.c.l.b16 %v440
    %v1008 = vunpack.c.h.b16 %v440
    %v1009 = vunpack.c.l.b16 %v441
    %v1010 = vunpack.c.h.b16 %v441
    %v1011 = vunpack.c.l.b16 %v442
    %v1012 = vunpack.c.l.b16 %v443
    %v1013 = vunpack.c.h.b16 %v443
    %v1014 = vunpack.c.l.b16 %v444
    %v1015 = vunpack.c.h.b16 %v444
    %v1016 = vunpack.c.l.b16 %v445
    %v1017 = vunpack.c.l.b16 %v446
    %v1018 = vunpack.c.h.b16 %v446
    %v1019 = vunpack.c.l.b16 %v447
    %v1020 = vunpack.c.h.b16 %v447
    %v1021 = vunpack.c.l.b16 %v448
    %v1022 = vunpack.c.l.b16 %v449
    %v1023 = vunpack.c.h.b16 %v449
    %v1024 = vunpack.c.l.b16 %v450
    %v1025 = vunpack.c.h.b16 %v450
    %v1026 = vunpack.c.l.b16 %v451
    %v1027 = vunpack.c.l.b16 %v452
    %v1028 = vunpack.c.h.b16 %v452
    %v1029 = vunpack.c.l.b16 %v453
    %v1030 = vunpack.c.h.b16 %v453
    %v1031 = vunpack.c.l.b16 %v454
    %v1032 = vunpack.c.l.b16 %v455
    %v1033 = vunpack.c.h.b16 %v455
    %v1034 = vunpack.c.l.b16 %v456
    %v1035 = vunpack.c.h.b16 %v456
    %v1036 = vunpack.c.l.b16 %v457
    %v1037 = vunpack.c.l.b16 %v458
    %v1038 = vunpack.c.h.b16 %v458
    %v1039 = vunpack.c.l.b16 %v459
    %v1040 = vunpack.c.h.b16 %v459
    %v1041 = vunpack.c.l.b16 %v460
    %v1042 = vunpack.c.l.b16 %v461
    %v1043 = vunpack.c.h.b16 %v461
    %v1044 = vunpack.c.l.b16 %v462
    %v1045 = vunpack.c.h.b16 %v462
    %v1046 = vunpack.c.l.b16 %v463
    %v1047 = vunpack.c.l.b16 %v464
    %v1048 = vunpack.c.h.b16 %v464
    %v1049 = vunpack.c.l.b16 %v465
    %v1050 = vunpack.c.h.b16 %v465
    %v1051 = vunpack.c.l.b16 %v466
    %v1052 = vunpack.c.l.b16 %v467
    %v1053 = vunpack.c.h.b16 %v467
    %v1054 = vunpack.c.l.b16 %v468
    %v1055 = vunpack.c.h.b16 %v468
    %v1056 = vunpack.c.l.b16 %v469
    %v1057 = vunpack.c.l.b16 %v470
    %v1058 = vunpack.c.h.b16 %v470
    %v1059 = vunpack.c.l.b16 %v471
    %v1060 = vunpack.c.h.b16 %v471
    %v1061 = vunpack.c.l.b16 %v472
    %v1062 = vunpack.c.l.b16 %v473
    %v1063 = vunpack.c.h.b16 %v473
    %v1064 = vunpack.c.l.b16 %v474
    %v1065 = vunpack.c.h.b16 %v474
    %v1066 = vunpack.c.l.b16 %v475
    %v1067 = vunpack.c.l.b16 %v476
    %v1068 = vunpack.c.h.b16 %v476
    %v1069 = vunpack.c.l.b16 %v477
    %v1070 = vunpack.c.h.b16 %v477
    %v1071 = vunpack.c.l.b16 %v478
    %v1072 = vunpack.c.l.b16 %v479
    %v1073 = vunpack.c.h.b16 %v479
    %v1074 = vunpack.c.l.b16 %v480
    %v1075 = vunpack.c.h.b16 %v480
    %v1076 = vunpack.c.l.b16 %v481
    %v1077 = vunpack.c.l.b16 %v482
    %v1078 = vunpack.c.h.b16 %v482
    %v1079 = vunpack.c.l.b16 %v483
    %v1080 = vunpack.c.h.b16 %v483
    %v1081 = vunpack.c.l.b16 %v484
    %v1082 = vunpack.c.l.b16 %v485
    %v1083 = vunpack.c.h.b16 %v485
    %v1084 = vunpack.c.l.b16 %v486
    %v1085 = vunpack.c.h.b16 %v486
    %v1086 = vunpack.c.l.b16 %v487
    %v1087 = vunpack.c.l.b16 %v488
    %v1088 = vunpack.c.h.b16 %v488
    %v1089 = vunpack.c.l.b16 %v489
    %v1090 = vunpack.c.h.b16 %v489
    %v1091 = vunpack.c.l.b16 %v490
    %v1092 = vunpack.c.l.b16 %v491
    %v1093 = vunpack.c.h.b16 %v491
    %v1094 = vunpack.c.l.b16 %v492
    %v1095 = vunpack.c.h.b16 %v492
    %v1096 = vunpack.c.l.b16 %v493
    %v1097 = vunpack.c.l.b16 %v494
    %v1098 = vunpack.c.h.b16 %v494
    %v1099 = vunpack.c.l.b16 %v495
    %v1100 = vunpack.c.h.b16 %v495
    %v1101 = vunpack.c.l.b16 %v496
    %v1102 = vunpack.c.l.b16 %v497
    %v1103 = vunpack.c.h.b16 %v497
    %v1104 = vunpack.c.l.b16 %v498
    %v1105 = vunpack.c.h.b16 %v498
    %v1106 = vunpack.c.l.b16 %v499
    %v1107 = vunpack.c.l.b16 %v500
    %v1108 = vunpack.c.h.b16 %v500
    %v1109 = vunpack.c.l.b16 %v501
    %v1110 = vunpack.c.h.b16 %v501
    %v1111 = vunpack.c.l.b16 %v502
    %v1112 = vunpack.c.l.b16 %v503
    %v1113 = vunpack.c.h.b16 %v503
    %v1114 = vunpack.c.l.b16 %v504
    %v1115 = vunpack.c.h.b16 %v504
    %v1116 = vunpack.c.l.b16 %v505
    %v1117 = vunpack.c.l.b16 %v506
    %v1118 = vunpack.c.h.b16 %v506
    %v1119 = vunpack.c.l.b16 %v507
    %v1120 = vunpack.c.h.b16 %v507
    %v1121 = vunpack.c.l.b16 %v508
    %v1122 = vunpack.c.l.b16 %v509
    %v1123 = vunpack.c.h.b16 %v509
    %v1124 = vunpack.c.l.b16 %v510
    %v1125 = vunpack.c.h.b16 %v510
    %v1126 = vunpack.c.l.b16 %v511
    %v1127 = vunpack.c.l.b16 %v512
    %v1128 = vunpack.c.h.b16 %v512
    %v1129 = vunpack.c.l.b16 %v513
    %v1130 = vunpack.c.h.b16 %v513
    %v1131 = vunpack.c.l.b16 %v514
    %v1132 = vunpack.c.l.b16 %v515
    %v1133 = vunpack.c.h.b16 %v515
    %v1134 = vunpack.c.l.b16 %v516
    %v1135 = vunpack.c.h.b16 %v516
    %v1136 = vunpack.c.l.b16 %v517
    %v1137 = vunpack.c.l.b16 %v518
    %v1138 = vunpack.c.h.b16 %v518
    %v1139 = vunpack.c.l.b16 %v519
    %v1140 = vunpack.c.h.b16 %v519
    %v1141 = vunpack.c.l.b16 %v520
    %v1142 = vunpack.c.l.b16 %v521
    %v1143 = vunpack.c.h.b16 %v521
    %v1144 = vunpack.c.l.b16 %v522
    %v1145 = vunpack.c.h.b16 %v522
    %v1146 = vunpack.c.l.b16 %v523
    %v1147 = vunpack.c.l.b16 %v524
    %v1148 = vunpack.c.h.b16 %v524
    %v1149 = vunpack.c.l.b16 %v525
    %v1150 = vunpack.c.h.b16 %v525
    %v1151 = vunpack.c.l.b16 %v526
    %v1152 = vunpack.c.l.b16 %v527
    %v1153 = vunpack.c.h.b16 %v527
    %v1154 = vunpack.c.l.b16 %v528
    %v1155 = vunpack.c.h.b16 %v528
    %v1156 = vunpack.c.l.b16 %v529
    %v1157 = vunpack.c.l.b16 %v530
    %v1158 = vunpack.c.h.b16 %v530
    %v1159 = vunpack.c.l.b16 %v531
    %v1160 = vunpack.c.h.b16 %v531
    %v1161 = vunpack.c.l.b16 %v532
    %v1162 = vunpack.c.l.b16 %v533
    %v1163 = vunpack.c.h.b16 %v533
    %v1164 = vunpack.c.l.b16 %v534
    %v1165 = vunpack.c.h.b16 %v534
    %v1166 = vunpack.c.l.b16 %v535
    %v1167 = vunpack.c.l.b16 %v536
    %v1168 = vunpack.c.h.b16 %v536
    %v1169 = vunpack.c.l.b16 %v537
    %v1170 = vunpack.c.h.b16 %v537
    %v1171 = vunpack.c.l.b16 %v538
    %v1172 = vunpack.c.l.b16 %v539
    %v1173 = vunpack.c.h.b16 %v539
    %v1174 = vunpack.c.l.b16 %v540
    %v1175 = vunpack.c.h.b16 %v540
    %v1176 = vunpack.c.l.b16 %v541
    %v1177 = vunpack.c.l.b16 %v542
    %v1178 = vunpack.c.h.b16 %v542
    %v1179 = vunpack.c.l.b16 %v543
    %v1180 = vunpack.c.h.b16 %v543
    %v1181 = vunpack.c.l.b16 %v544
    %v1182 = vunpack.c.l.b16 %v545
    %v1183 = vunpack.c.h.b16 %v545
    %v1184 = vunpack.c.l.b16 %v546
    %v1185 = vunpack.c.h.b16 %v546
    %v1186 = vunpack.c.l.b16 %v547
    %v1187 = vunpack.c.l.b16 %v548
    %v1188 = vunpack.c.h.b16 %v548
    %v1189 = vunpack.c.l.b16 %v549
    %v1190 = vunpack.c.h.b16 %v549
    %v1191 = vunpack.c.l.b16 %v550
    %v1192 = vunpack.c.l.b16 %v551
    %v1193 = vunpack.c.h.b16 %v551
    %v1194 = vunpack.c.l.b16 %v552
    %v1195 = vunpack.c.h.b16 %v552
    %v1196 = vunpack.c.l.b16 %v553
    %v1197 = vunpack.c.l.b16 %v554
    %v1198 = vunpack.c.h.b16 %v554
    %v1199 = vunpack.c.l.b16 %v555
    %v1200 = vunpack.c.h.b16 %v555
    %v1201 = vunpack.c.l.b16 %v556
    %v1202 = vunpack.c.l.b16 %v557
    %v1203 = vunpack.c.h.b16 %v557
    %v1204 = vunpack.c.l.b16 %v558
    %v1205 = vunpack.c.h.b16 %v558
    %v1206 = vunpack.c.l.b16 %v559
    %v1207 = vunpack.c.l.b16 %v560
    %v1208 = vunpack.c.h.b16 %v560
    %v1209 = vunpack.c.l.b16 %v561
    %v1210 = vunpack.c.h.b16 %v561
    %v1211 = vunpack.c.l.b16 %v562
    %v1212 = vunpack.c.l.b16 %v563
    %v1213 = vunpack.c.h.b16 %v563
    %v1214 = vunpack.c.l.b16 %v564
    %v1215 = vunpack.c.h.b16 %v564
    %v1216 = vunpack.c.l.b16 %v565
    %v1217 = vunpack.c.l.b16 %v566
    %v1218 = vunpack.c.h.b16 %v566
    %v1219 = vunpack.c.l.b16 %v567
    %v1220 = vunpack.c.h.b16 %v567
    %v1221 = vunpack.c.l.b16 %v568
    %v1222 = vunpack.c.l.b16 %v569
    %v1223 = vunpack.c.h.b16 %v569
    %v1224 = vunpack.c.l.b16 %v570
    %v1225 = vunpack.c.h.b16 %v570
    %v1226 = vunpack.c.l.b16 %v571
    %v1227 = vunpack.c.l.b16 %v572
    %v1228 = vunpack.c.h.b16 %v572
    %v1229 = vunpack.c.l.b16 %v573
    %v1230 = vunpack.c.h.b16 %v573
    %v1231 = vunpack.c.l.b16 %v574
    %v1232 = vunpack.c.l.b16 %v575
    %v1233 = vunpack.c.h.b16 %v575
    %v1234 = vunpack.c.l.b16 %v576
    %v1235 = vunpack.c.h.b16 %v576
    %v1236 = vunpack.c.l.b16 %v577
    %v1237 = vunpack.c.l.b16 %v578
    %v1238 = vunpack.c.h.b16 %v578
    %v1239 = vunpack.c.l.b16 %v579
    %v1240 = vunpack.c.h.b16 %v579
    %v1241 = vunpack.c.l.b16 %v580
    %v1242 = vunpack.c.l.b16 %v581
    %v1243 = vunpack.c.h.b16 %v581
    %v1244 = vunpack.c.l.b16 %v582
    %v1245 = vunpack.c.h.b16 %v582
    %v1246 = vunpack.c.l.b16 %v583
    %v1247 = vunpack.c.l.b16 %v584
    %v1248 = vunpack.c.h.b16 %v584
    %v1249 = vunpack.c.l.b16 %v585
    %v1250 = vunpack.c.h.b16 %v585
    %v1251 = vunpack.c.l.b16 %v586
    %v1252 = vunpack.c.l.b16 %v587
    %v1253 = vunpack.c.h.b16 %v587
    %v1254 = vunpack.c.l.b16 %v588
    %v1255 = vunpack.c.h.b16 %v588
    %v1256 = vunpack.c.l.b16 %v589
    %v1257 = vpack.c.b16 %v862, %v857
    %v1258 = vpack.c.b16 %v863, %v858
    %v1259 = vpack.c.b16 %v864, %v859
    %v1260 = vpack.c.b16 %v865, %v860
    %v1261 = vpack.c.b16 %v866, %v861
    %v1262 = vpack.c.b16 %v872, %v867
    %v1263 = vpack.c.b16 %v873, %v868
    %v1264 = vpack.c.b16 %v874, %v869
    %v1265 = vpack.c.b16 %v875, %v870
    %v1266 = vpack.c.b16 %v876, %v871
    %v1267 = vpack.c.b16 %v882, %v877
    %v1268 = vpack.c.b16 %v883, %v878
    %v1269 = vpack.c.b16 %v884, %v879
    %v1270 = vpack.c.b16 %v885, %v880
    %v1271 = vpack.c.b16 %v886, %v881
    %v1272 = vpack.c.b16 %v892, %v887
    %v1273 = vpack.c.b16 %v893, %v888
    %v1274 = vpack.c.b16 %v894, %v889
    %v1275 = vpack.c.b16 %v895, %v890
    %v1276 = vpack.c.b16 %v896, %v891
    %v1277 = vpack.c.b16 %v902, %v897
    %v1278 = vpack.c.b16 %v903, %v898
    %v1279 = vpack.c.b16 %v904, %v899
    %v1280 = vpack.c.b16 %v905, %v900
    %v1281 = vpack.c.b16 %v906, %v901
    %v1282 = vpack.c.b16 %v912, %v907
    %v1283 = vpack.c.b16 %v913, %v908
    %v1284 = vpack.c.b16 %v914, %v909
    %v1285 = vpack.c.b16 %v915, %v910
    %v1286 = vpack.c.b16 %v916, %v911
    %v1287 = vpack.c.b16 %v922, %v917
    %v1288 = vpack.c.b16 %v923, %v918
    %v1289 = vpack.c.b16 %v924, %v919
    %v1290 = vpack.c.b16 %v925, %v920
    %v1291 = vpack.c.b16 %v926, %v921
    %v1292 = vpack.c.b16 %v932, %v927
    %v1293 = vpack.c.b16 %v933, %v928
    %v1294 = vpack.c.b16 %v934, %v929
    %v1295 = vpack.c.b16 %v935, %v930
    %v1296 = vpack.c.b16 %v936, %v931
    %v1297 = vpack.c.b16 %v942, %v937
    %v1298 = vpack.c.b16 %v943, %v938
    %v1299 = vpack.c.b16 %v944, %v939
    %v1300 = vpack.c.b16 %v945, %v940
    %v1301 = vpack.c.b16 %v946, %v941
    %v1302 = vpack.c.b16 %v952, %v947
    %v1303 = vpack.c.b16 %v953, %v948
    %v1304 = vpack.c.b16 %v954, %v949
    %v1305 = vpack.c.b16 %v955, %v950
    %v1306 = vpack.c.b16 %v956, %v951
    %v1307 = vpack.c.b16 %v962, %v957
    %v1308 = vpack.c.b16 %v963, %v958
    %v1309 = vpack.c.b16 %v964, %v959
    %v1310 = vpack.c.b16 %v965, %v960
    %v1311 = vpack.c.b16 %v966, %v961
    %v1312 = vpack.c.b16 %v972, %v967
    %v1313 = vpack.c.b16 %v973, %v968
    %v1314 = vpack.c.b16 %v974, %v969
    %v1315 = vpack.c.b16 %v975, %v970
    %v1316 = vpack.c.b16 %v976, %v971
    %v1317 = vpack.c.b16 %v982, %v977
    %v1318 = vpack.c.b16 %v983, %v978
    %v1319 = vpack.c.b16 %v984, %v979
    %v1320 = vpack.c.b16 %v985, %v980
    %v1321 = vpack.c.b16 %v986, %v981
    %v1322 = vpack.c.b16 %v992, %v987
    %v1323 = vpack.c.b16 %v993, %v988
    %v1324 = vpack.c.b16 %v994, %v989
    %v1325 = vpack.c.b16 %v995, %v990
    %v1326 = vpack.c.b16 %v996, %v991
    %v1327 = vpack.c.b16 %v1002, %v997
    %v1328 = vpack.c.b16 %v1003, %v998
    %v1329 = vpack.c.b16 %v1004, %v999
    %v1330 = vpack.c.b16 %v1005, %v1000
    %v1331 = vpack.c.b16 %v1006, %v1001
    %v1332 = vpack.c.b16 %v1012, %v1007
    %v1333 = vpack.c.b16 %v1013, %v1008
    %v1334 = vpack.c.b16 %v1014, %v1009
    %v1335 = vpack.c.b16 %v1015, %v1010
    %v1336 = vpack.c.b16 %v1016, %v1011
    %v1337 = vpack.c.b16 %v1022, %v1017
    %v1338 = vpack.c.b16 %v1023, %v1018
    %v1339 = vpack.c.b16 %v1024, %v1019
    %v1340 = vpack.c.b16 %v1025, %v1020
    %v1341 = vpack.c.b16 %v1026, %v1021
    %v1342 = vpack.c.b16 %v1032, %v1027
    %v1343 = vpack.c.b16 %v1033, %v1028
    %v1344 = vpack.c.b16 %v1034, %v1029
    %v1345 = vpack.c.b16 %v1035, %v1030
    %v1346 = vpack.c.b16 %v1036, %v1031
    %v1347 = vpack.c.b16 %v1042, %v1037
    %v1348 = vpack.c.b16 %v1043, %v1038
    %v1349 = vpack.c.b16 %v1044, %v1039
    %v1350 = vpack.c.b16 %v1045, %v1040
    %v1351 = vpack.c.b16 %v1046, %v1041
    %v1352 = vpack.c.b16 %v1052, %v1047
    %v1353 = vpack.c.b16 %v1053, %v1048
    %v1354 = vpack.c.b16 %v1054, %v1049
    %v1355 = vpack.c.b16 %v1055, %v1050
    %v1356 = vpack.c.b16 %v1056, %v1051
    %v1357 = vpack.c.b16 %v1062, %v1057
    %v1358 = vpack.c.b16 %v1063, %v1058
    %v1359 = vpack.c.b16 %v1064, %v1059
    %v1360 = vpack.c.b16 %v1065, %v1060
    %v1361 = vpack.c.b16 %v1066, %v1061
    %v1362 = vpack.c.b16 %v1072, %v1067
    %v1363 = vpack.c.b16 %v1073, %v1068
    %v1364 = vpack.c.b16 %v1074, %v1069
    %v1365 = vpack.c.b16 %v1075, %v1070
    %v1366 = vpack.c.b16 %v1076, %v1071
    %v1367 = vpack.c.b16 %v1082, %v1077
    %v1368 = vpack.c.b16 %v1083, %v1078
    %v1369 = vpack.c.b16 %v1084, %v1079
    %v1370 = vpack.c.b16 %v1085, %v1080
    %v1371 = vpack.c.b16 %v1086, %v1081
    %v1372 = vpack.c.b16 %v1092, %v1087
    %v1373 = vpack.c.b16 %v1093, %v1088
    %v1374 = vpack.c.b16 %v1094, %v1089
    %v1375 = vpack.c.b16 %v1095, %v1090
    %v1376 = vpack.c.b16 %v1096, %v1091
    %v1377 = vpack.c.b16 %v1102, %v1097
    %v1378 = vpack.c.b16 %v1103, %v1098
    %v1379 = vpack.c.b16 %v1104, %v1099
    %v1380 = vpack.c.b16 %v1105, %v1100
    %v1381 = vpack.c.b16 %v1106, %v1101
    %v1382 = vpack.c.b16 %v1112, %v1107
    %v1383 = vpack.c.b16 %v1113, %v1108
    %v1384 = vpack.c.b16 %v1114, %v1109
    %v1385 = vpack.c.b16 %v1115, %v1110
    %v1386 = vpack.c.b16 %v1116, %v1111
    %v1387 = vpack.c.b16 %v1122, %v1117
    %v1388 = vpack.c.b16 %v1123, %v1118
    %v1389 = vpack.c.b16 %v1124, %v1119
    %v1390 = vpack.c.b16 %v1125, %v1120
    %v1391 = vpack.c.b16 %v1126, %v1121
    %v1392 = vpack.c.b16 %v1132, %v1127
    %v1393 = vpack.c.b16 %v1133, %v1128
    %v1394 = vpack.c.b16 %v1134, %v1129
    %v1395 = vpack.c.b16 %v1135, %v1130
    %v1396 = vpack.c.b16 %v1136, %v1131
    %v1397 = vpack.c.b16 %v1142, %v1137
    %v1398 = vpack.c.b16 %v1143, %v1138
    %v1399 = vpack.c.b16 %v1144, %v1139
    %v1400 = vpack.c.b16 %v1145, %v1140
    %v1401 = vpack.c.b16 %v1146, %v1141
    %v1402 = vpack.c.b16 %v1152, %v1147
    %v1403 = vpack.c.b16 %v1153, %v1148
    %v1404 = vpack.c.b16 %v1154, %v1149
    %v1405 = vpack.c.b16 %v1155, %v1150
    %v1406 = vpack.c.b16 %v1156, %v1151
    %v1407 = vpack.c.b16 %v1162, %v1157
    %v1408 = vpack.c.b16 %v1163, %v1158
    %v1409 = vpack.c.b16 %v1164, %v1159
    %v1410 = vpack.c.b16 %v1165, %v1160
    %v1411 = vpack.c.b16 %v1166, %v1161
    %v1412 = vpack.c.b16 %v1172, %v1167
    %v1413 = vpack.c.b16 %v1173, %v1168
    %v1414 = vpack.c.b16 %v1174, %v1169
    %v1415 = vpack.c.b16 %v1175, %v1170
    %v1416 = vpack.c.b16 %v1176, %v1171
    %v1417 = vpack.c.b16 %v1182, %v1177
    %v1418 = vpack.c.b16 %v1183, %v1178
    %v1419 = vpack.c.b16 %v1184, %v1179
    %v1420 = vpack.c.b16 %v1185, %v1180
    %v1421 = vpack.c.b16 %v1186, %v1181
    %v1422 = vpack.c.b16 %v1192, %v1187
    %v1423 = vpack.c.b16 %v1193, %v1188
    %v1424 = vpack.c.b16 %v1194, %v1189
    %v1425 = vpack.c.b16 %v1195, %v1190
    %v1426 = vpack.c.b16 %v1196, %v1191
    %v1427 = vpack.c.b16 %v1202, %v1197
    %v1428 = vpack.c.b16 %v1203, %v1198
    %v1429 = vpack.c.b16 %v1204, %v1199
    %v1430 = vpack.c.b16 %v1205, %v1200
    %v1431 = vpack.c.b16 %v1206, %v1201
    %v1432 = vpack.c.b16 %v1212, %v1207
    %v1433 = vpack.c.b16 %v1213, %v1208
    %v1434 = vpack.c.b16 %v1214, %v1209
    %v1435 = vpack.c.b16 %v1215, %v1210
    %v1436 = vpack.c.b16 %v1216, %v1211
    %v1437 = vpack.c.b16 %v1222, %v1217
    %v1438 = vpack.c.b16 %v1223, %v1218
    %v1439 = vpack.c.b16 %v1224, %v1219
    %v1440 = vpack.c.b16 %v1225, %v1220
    %v1441 = vpack.c.b16 %v1226, %v1221
    %v1442 = vpack.c.b16 %v1232, %v1227
    %v1443 = vpack.c.b16 %v1233, %v1228
    %v1444 = vpack.c.b16 %v1234, %v1229
    %v1445 = vpack.c.b16 %v1235, %v1230
    %v1446 = vpack.c.b16 %v1236, %v1231
    %v1447 = vpack.c.b16 %v1242, %v1237
    %v1448 = vpack.c.b16 %v1243, %v1238
    %v1449 = vpack.c.b16 %v1244, %v1239
    %v1450 = vpack.c.b16 %v1245, %v1240
    %v1451 = vpack.c.b16 %v1246, %v1241
    %v1452 = vpack.c.b16 %v1252, %v1247
    %v1453 = vpack.c.b16 %v1253, %v1248
    %v1454 = vpack.c.b16 %v1254, %v1249
    %v1455 = vpack.c.b16 %v1255, %v1250
    %v1456 = vpack.c.b16 %v1256, %v1251
    %1657 = vmatprep.subr.bf16.mxu0 %v1258
    %1658 = vmatpush1.bf16.msra.mxu0 %v1257
    %1659 = vmatprep.subr.bf16.mxu0 %v1263
    %1660 = vmatpush1.bf16.msra.mxu0 %v1262
    %1661 = vmatprep.subr.bf16.mxu0 %v1268
    %1662 = vmatpush1.bf16.msra.mxu0 %v1267
    %1663 = vmatprep.subr.bf16.mxu0 %v1273
    %1664 = vmatpush1.bf16.msra.mxu0 %v1272
    %1665 = vmatprep.subr.bf16.mxu0 %v1278
    %1666 = vmatpush1.bf16.msra.mxu0 %v1277
    %1667 = vmatprep.subr.bf16.mxu0 %v1283
    %1668 = vmatpush1.bf16.msra.mxu0 %v1282
    %1669 = vmatprep.subr.bf16.mxu0 %v1288
    %1670 = vmatpush1.bf16.msra.mxu0 %v1287
    %1671 = vmatprep.subr.bf16.mxu0 %v1293
    %1672 = vmatpush1.bf16.msra.mxu0 %v1292
    %1673 = vmatprep.subr.bf16.mxu0 %v1298
    %1674 = vmatpush1.bf16.msra.mxu0 %v1297
    %1675 = vmatprep.subr.bf16.mxu0 %v1303
    %1676 = vmatpush1.bf16.msra.mxu0 %v1302
    %1677 = vmatprep.subr.bf16.mxu0 %v1308
    %1678 = vmatpush1.bf16.msra.mxu0 %v1307
    %1679 = vmatprep.subr.bf16.mxu0 %v1313
    %1680 = vmatpush1.bf16.msra.mxu0 %v1312
    %1681 = vmatprep.subr.bf16.mxu0 %v1318
    %1682 = vmatpush1.bf16.msra.mxu0 %v1317
    %1683 = vmatprep.subr.bf16.mxu0 %v1323
    %1684 = vmatpush1.bf16.msra.mxu0 %v1322
    %1685 = vmatprep.subr.bf16.mxu0 %v1328
    %1686 = vmatpush1.bf16.msra.mxu0 %v1327
    %1687 = vmatprep.subr.bf16.mxu0 %v1333
    %1688 = vmatpush1.bf16.msra.mxu0 %v1332
    %1689 = vmatprep.mubr.bf16.mxu0 %v346
    %1690 = vmatmul.mubr.bf16.gmra.mrb[0].mxu0 %v345
    %v1691 = vpop.f32.mrb[0].mxu0
    %v1692 = vadd.f32 %v595, %v1691
    %v1693 = vpop.f32.mrb[0].mxu0
    %v1694 = vadd.f32 %v599, %v1693
    %v1695 = vpop.f32.mrb[0].mxu0
    %v1696 = vpop.f32.mrb[0].mxu0
    %1697 = vdwg.mxu0
    %1698 = vmatprep.subr.bf16.mxu0 %v1338
    %1699 = vmatpush1.bf16.msra.mxu0 %v1337
    %1700 = vmatprep.subr.bf16.mxu0 %v1343
    %1701 = vmatpush1.bf16.msra.mxu0 %v1342
    %1702 = vmatprep.subr.bf16.mxu0 %v1348
    %1703 = vmatpush1.bf16.msra.mxu0 %v1347
    %1704 = vmatprep.subr.bf16.mxu0 %v1353
    %1705 = vmatpush1.bf16.msra.mxu0 %v1352
    %1706 = vmatprep.subr.bf16.mxu0 %v1358
    %1707 = vmatpush1.bf16.msra.mxu0 %v1357
    %1708 = vmatprep.subr.bf16.mxu0 %v1363
    %1709 = vmatpush1.bf16.msra.mxu0 %v1362
    %1710 = vmatprep.subr.bf16.mxu0 %v1368
    %1711 = vmatpush1.bf16.msra.mxu0 %v1367
    %1712 = vmatprep.subr.bf16.mxu0 %v1373
    %1713 = vmatpush1.bf16.msra.mxu0 %v1372
    %1714 = vmatprep.subr.bf16.mxu0 %v1378
    %1715 = vmatpush1.bf16.msra.mxu0 %v1377
    %1716 = vmatprep.subr.bf16.mxu0 %v1383
    %1717 = vmatpush1.bf16.msra.mxu0 %v1382
    %1718 = vmatprep.subr.bf16.mxu0 %v1388
    %1719 = vmatpush1.bf16.msra.mxu0 %v1387
    %1720 = vmatprep.subr.bf16.mxu0 %v1393
    %1721 = vmatpush1.bf16.msra.mxu0 %v1392
    %1722 = vmatprep.subr.bf16.mxu0 %v1398
    %1723 = vmatpush1.bf16.msra.mxu0 %v1397
    %1724 = vmatprep.subr.bf16.mxu0 %v1403
    %1725 = vmatpush1.bf16.msra.mxu0 %v1402
    %1726 = vmatprep.subr.bf16.mxu0 %v1408
    %1727 = vmatpush1.bf16.msra.mxu0 %v1407
    %1728 = vmatprep.subr.bf16.mxu0 %v1413
    %1729 = vmatpush1.bf16.msra.mxu0 %v1412
    %1730 = vmatprep.mubr.bf16.mxu0 %v348
    %1731 = vmatmul.mubr.bf16.gmra.mrb[0].mxu0 %v347
    %v1732 = vpop.f32.mrb[0].mxu0
    %v1733 = vadd.f32 %v1692, %v1732
    %v1734 = vpop.f32.mrb[0].mxu0
    %v1735 = vadd.f32 %v1694, %v1734
    %v1736 = vpop.f32.mrb[0].mxu0
    %v1737 = vpop.f32.mrb[0].mxu0
    %1738 = vdwg.mxu0
    %1739 = vmatprep.subr.bf16.mxu0 %v1418
    %1740 = vmatpush1.bf16.msra.mxu0 %v1417
    %1741 = vmatprep.subr.bf16.mxu0 %v1423
    %1742 = vmatpush1.bf16.msra.mxu0 %v1422
    %1743 = vmatprep.subr.bf16.mxu0 %v1428
    %1744 = vmatpush1.bf16.msra.mxu0 %v1427
    %1745 = vmatprep.subr.bf16.mxu0 %v1433
    %1746 = vmatpush1.bf16.msra.mxu0 %v1432
    %1747 = vmatprep.subr.bf16.mxu0 %v1438
    %1748 = vmatpush1.bf16.msra.mxu0 %v1437
    %1749 = vmatprep.subr.bf16.mxu0 %v1443
    %1750 = vmatpush1.bf16.msra.mxu0 %v1442
    %1751 = vmatprep.subr.bf16.mxu0 %v1448
    %1752 = vmatpush1.bf16.msra.mxu0 %v1447
    %1753 = vmatprep.subr.bf16.mxu0 %v1453
    %1754 = vmatpush1.bf16.msra.mxu0 %v1452
    %1755 = vmatprep.subr.bf16.mxu0 0
    %1756 = vmatpush1.bf16.msra.mxu0 0
    %1757 = vmatprep.subr.bf16.mxu0 0
    %1758 = vmatpush1.bf16.msra.mxu0 0
    %1759 = vmatprep.subr.bf16.mxu0 0
    %1760 = vmatpush1.bf16.msra.mxu0 0
    %1761 = vmatprep.subr.bf16.mxu0 0
    %1762 = vmatpush1.bf16.msra.mxu0 0
    %1763 = vmatprep.subr.bf16.mxu0 0
    %1764 = vmatpush1.bf16.msra.mxu0 0
    %1765 = vmatprep.subr.bf16.mxu0 0
    %1766 = vmatpush1.bf16.msra.mxu0 0
    %1767 = vmatprep.subr.bf16.mxu0 0
    %1768 = vmatpush1.bf16.msra.mxu0 0
    %1769 = vmatprep.subr.bf16.mxu0 0
    %1770 = vmatpush1.bf16.msra.mxu0 0
    %1771 = vmatprep.mubr.bf16.mxu0 0
    %1772 = vmatmul.mubr.bf16.gmra.mrb[0].mxu0 %v349
    %v1773 = vpop.f32.mrb[0].mxu0
    %v1774 = vadd.f32 %v1733, %v1773
    %v1775 = vpop.f32.mrb[0].mxu0
    %v1776 = vadd.f32 %v1735, %v1775
    %v1777 = vpop.f32.mrb[0].mxu0
    %v1778 = vpop.f32.mrb[0].mxu0
    %1779 = vdwg.mxu0
    %1780 = vmatprep.subr.bf16.mxu0 %v1260
    %1781 = vmatpush1.bf16.msra.mxu0 %v1259
    %1782 = vmatprep.subr.bf16.mxu0 %v1265
    %1783 = vmatpush1.bf16.msra.mxu0 %v1264
    %1784 = vmatprep.subr.bf16.mxu0 %v1270
    %1785 = vmatpush1.bf16.msra.mxu0 %v1269
    %1786 = vmatprep.subr.bf16.mxu0 %v1275
    %1787 = vmatpush1.bf16.msra.mxu0 %v1274
    %1788 = vmatprep.subr.bf16.mxu0 %v1280
    %1789 = vmatpush1.bf16.msra.mxu0 %v1279
    %1790 = vmatprep.subr.bf16.mxu0 %v1285
    %1791 = vmatpush1.bf16.msra.mxu0 %v1284
    %1792 = vmatprep.subr.bf16.mxu0 %v1290
    %1793 = vmatpush1.bf16.msra.mxu0 %v1289
    %1794 = vmatprep.subr.bf16.mxu0 %v1295
    %1795 = vmatpush1.bf16.msra.mxu0 %v1294
    %1796 = vmatprep.subr.bf16.mxu0 %v1300
    %1797 = vmatpush1.bf16.msra.mxu0 %v1299
    %1798 = vmatprep.subr.bf16.mxu0 %v1305
    %1799 = vmatpush1.bf16.msra.mxu0 %v1304
    %1800 = vmatprep.subr.bf16.mxu0 %v1310
    %1801 = vmatpush1.bf16.msra.mxu0 %v1309
    %1802 = vmatprep.subr.bf16.mxu0 %v1315
    %1803 = vmatpush1.bf16.msra.mxu0 %v1314
    %1804 = vmatprep.subr.bf16.mxu0 %v1320
    %1805 = vmatpush1.bf16.msra.mxu0 %v1319
    %1806 = vmatprep.subr.bf16.mxu0 %v1325
    %1807 = vmatpush1.bf16.msra.mxu0 %v1324
    %1808 = vmatprep.subr.bf16.mxu0 %v1330
    %1809 = vmatpush1.bf16.msra.mxu0 %v1329
    %1810 = vmatprep.subr.bf16.mxu0 %v1335
    %1811 = vmatpush1.bf16.msra.mxu0 %v1334
    %1812 = vmatprep.mubr.bf16.mxu0 %v346
    %1813 = vmatmul.mubr.bf16.gmra.mrb[0].mxu0 %v345
    %v1814 = vpop.f32.mrb[0].mxu0
    %v1815 = vadd.f32 %v603, %v1814
    %v1816 = vpop.f32.mrb[0].mxu0
    %v1817 = vadd.f32 %v607, %v1816
    %v1818 = vpop.f32.mrb[0].mxu0
    %v1819 = vpop.f32.mrb[0].mxu0
    %1820 = vdwg.mxu0
    %1821 = vmatprep.subr.bf16.mxu0 %v1340
    %1822 = vmatpush1.bf16.msra.mxu0 %v1339
    %1823 = vmatprep.subr.bf16.mxu0 %v1345
    %1824 = vmatpush1.bf16.msra.mxu0 %v1344
    %1825 = vmatprep.subr.bf16.mxu0 %v1350
    %1826 = vmatpush1.bf16.msra.mxu0 %v1349
    %1827 = vmatprep.subr.bf16.mxu0 %v1355
    %1828 = vmatpush1.bf16.msra.mxu0 %v1354
    %1829 = vmatprep.subr.bf16.mxu0 %v1360
    %1830 = vmatpush1.bf16.msra.mxu0 %v1359
    %1831 = vmatprep.subr.bf16.mxu0 %v1365
    %1832 = vmatpush1.bf16.msra.mxu0 %v1364
    %1833 = vmatprep.subr.bf16.mxu0 %v1370
    %1834 = vmatpush1.bf16.msra.mxu0 %v1369
    %1835 = vmatprep.subr.bf16.mxu0 %v1375
    %1836 = vmatpush1.bf16.msra.mxu0 %v1374
    %1837 = vmatprep.subr.bf16.mxu0 %v1380
    %1838 = vmatpush1.bf16.msra.mxu0 %v1379
    %1839 = vmatprep.subr.bf16.mxu0 %v1385
    %1840 = vmatpush1.bf16.msra.mxu0 %v1384
    %1841 = vmatprep.subr.bf16.mxu0 %v1390
    %1842 = vmatpush1.bf16.msra.mxu0 %v1389
    %1843 = vmatprep.subr.bf16.mxu0 %v1395
    %1844 = vmatpush1.bf16.msra.mxu0 %v1394
    %1845 = vmatprep.subr.bf16.mxu0 %v1400
    %1846 = vmatpush1.bf16.msra.mxu0 %v1399
    %1847 = vmatprep.subr.bf16.mxu0 %v1405
    %1848 = vmatpush1.bf16.msra.mxu0 %v1404
    %1849 = vmatprep.subr.bf16.mxu0 %v1410
    %1850 = vmatpush1.bf16.msra.mxu0 %v1409
    %1851 = vmatprep.subr.bf16.mxu0 %v1415
    %1852 = vmatpush1.bf16.msra.mxu0 %v1414
    %1853 = vmatprep.mubr.bf16.mxu0 %v348
    %1854 = vmatmul.mubr.bf16.gmra.mrb[0].mxu0 %v347
    %v1855 = vpop.f32.mrb[0].mxu0
    %v1856 = vadd.f32 %v1815, %v1855
    %v1857 = vpop.f32.mrb[0].mxu0
    %v1858 = vadd.f32 %v1817, %v1857
    %v1859 = vpop.f32.mrb[0].mxu0
    %v1860 = vpop.f32.mrb[0].mxu0
    %1861 = vdwg.mxu0
    %1862 = vmatprep.subr.bf16.mxu0 %v1420
    %1863 = vmatpush1.bf16.msra.mxu0 %v1419
    %1864 = vmatprep.subr.bf16.mxu0 %v1425
    %1865 = vmatpush1.bf16.msra.mxu0 %v1424
    %1866 = vmatprep.subr.bf16.mxu0 %v1430
    %1867 = vmatpush1.bf16.msra.mxu0 %v1429
    %1868 = vmatprep.subr.bf16.mxu0 %v1435
    %1869 = vmatpush1.bf16.msra.mxu0 %v1434
    %1870 = vmatprep.subr.bf16.mxu0 %v1440
    %1871 = vmatpush1.bf16.msra.mxu0 %v1439
    %1872 = vmatprep.subr.bf16.mxu0 %v1445
    %1873 = vmatpush1.bf16.msra.mxu0 %v1444
    %1874 = vmatprep.subr.bf16.mxu0 %v1450
    %1875 = vmatpush1.bf16.msra.mxu0 %v1449
    %1876 = vmatprep.subr.bf16.mxu0 %v1455
    %1877 = vmatpush1.bf16.msra.mxu0 %v1454
    %1878 = vmatprep.subr.bf16.mxu0 0
    %1879 = vmatpush1.bf16.msra.mxu0 0
    %1880 = vmatprep.subr.bf16.mxu0 0
    %1881 = vmatpush1.bf16.msra.mxu0 0
    %1882 = vmatprep.subr.bf16.mxu0 0
    %1883 = vmatpush1.bf16.msra.mxu0 0
    %1884 = vmatprep.subr.bf16.mxu0 0
    %1885 = vmatpush1.bf16.msra.mxu0 0
    %1886 = vmatprep.subr.bf16.mxu0 0
    %1887 = vmatpush1.bf16.msra.mxu0 0
    %1888 = vmatprep.subr.bf16.mxu0 0
    %1889 = vmatpush1.bf16.msra.mxu0 0
    %1890 = vmatprep.subr.bf16.mxu0 0
    %1891 = vmatpush1.bf16.msra.mxu0 0
    %1892 = vmatprep.subr.bf16.mxu0 0
    %1893 = vmatpush1.bf16.msra.mxu0 0
    %1894 = vmatprep.mubr.bf16.mxu0 0
    %1895 = vmatmul.mubr.bf16.gmra.mrb[0].mxu0 %v349
    %v1896 = vpop.f32.mrb[0].mxu0
    %v1897 = vadd.f32 %v1856, %v1896
    %v1898 = vpop.f32.mrb[0].mxu0
    %v1899 = vadd.f32 %v1858, %v1898
    %v1900 = vpop.f32.mrb[0].mxu0
    %v1901 = vpop.f32.mrb[0].mxu0
    %1902 = vdwg.mxu0
    %1903 = vmatprep.subr.bf16.mxu0 0
    %1904 = vmatpush1.bf16.msra.mxu0 %v1261
    %1905 = vmatprep.subr.bf16.mxu0 0
    %1906 = vmatpush1.bf16.msra.mxu0 %v1266
    %1907 = vmatprep.subr.bf16.mxu0 0
    %1908 = vmatpush1.bf16.msra.mxu0 %v1271
    %1909 = vmatprep.subr.bf16.mxu0 0
    %1910 = vmatpush1.bf16.msra.mxu0 %v1276
    %1911 = vmatprep.subr.bf16.mxu0 0
    %1912 = vmatpush1.bf16.msra.mxu0 %v1281
    %1913 = vmatprep.subr.bf16.mxu0 0
    %1914 = vmatpush1.bf16.msra.mxu0 %v1286
    %1915 = vmatprep.subr.bf16.mxu0 0
    %1916 = vmatpush1.bf16.msra.mxu0 %v1291
    %1917 = vmatprep.subr.bf16.mxu0 0
    %1918 = vmatpush1.bf16.msra.mxu0 %v1296
    %1919 = vmatprep.subr.bf16.mxu0 0
    %1920 = vmatpush1.bf16.msra.mxu0 %v1301
    %1921 = vmatprep.subr.bf16.mxu0 0
    %1922 = vmatpush1.bf16.msra.mxu0 %v1306
    %1923 = vmatprep.subr.bf16.mxu0 0
    %1924 = vmatpush1.bf16.msra.mxu0 %v1311
    %1925 = vmatprep.subr.bf16.mxu0 0
    %1926 = vmatpush1.bf16.msra.mxu0 %v1316
    %1927 = vmatprep.subr.bf16.mxu0 0
    %1928 = vmatpush1.bf16.msra.mxu0 %v1321
    %1929 = vmatprep.subr.bf16.mxu0 0
    %1930 = vmatpush1.bf16.msra.mxu0 %v1326
    %1931 = vmatprep.subr.bf16.mxu0 0
    %1932 = vmatpush1.bf16.msra.mxu0 %v1331
    %1933 = vmatprep.subr.bf16.mxu0 0
    %1934 = vmatpush1.bf16.msra.mxu0 %v1336
    %1935 = vmatprep.mubr.bf16.mxu0 %v346
    %1936 = vmatmul.mubr.bf16.gmra.mrb[0].mxu0 %v345
    %v1937 = vpop.f32.mrb[0].mxu0
    %v1938 = vadd.f32 %v611, %v1937
    %v1939 = vpop.f32.mrb[0].mxu0
    %v1940 = vpop.f32.mrb[0].mxu0
    %v1941 = vpop.f32.mrb[0].mxu0
    %1942 = vdwg.mxu0
    %1943 = vmatprep.subr.bf16.mxu0 0
    %1944 = vmatpush1.bf16.msra.mxu0 %v1341
    %1945 = vmatprep.subr.bf16.mxu0 0
    %1946 = vmatpush1.bf16.msra.mxu0 %v1346
    %1947 = vmatprep.subr.bf16.mxu0 0
    %1948 = vmatpush1.bf16.msra.mxu0 %v1351
    %1949 = vmatprep.subr.bf16.mxu0 0
    %1950 = vmatpush1.bf16.msra.mxu0 %v1356
    %1951 = vmatprep.subr.bf16.mxu0 0
    %1952 = vmatpush1.bf16.msra.mxu0 %v1361
    %1953 = vmatprep.subr.bf16.mxu0 0
    %1954 = vmatpush1.bf16.msra.mxu0 %v1366
    %1955 = vmatprep.subr.bf16.mxu0 0
    %1956 = vmatpush1.bf16.msra.mxu0 %v1371
    %1957 = vmatprep.subr.bf16.mxu0 0
    %1958 = vmatpush1.bf16.msra.mxu0 %v1376
    %1959 = vmatprep.subr.bf16.mxu0 0
    %1960 = vmatpush1.bf16.msra.mxu0 %v1381
    %1961 = vmatprep.subr.bf16.mxu0 0
    %1962 = vmatpush1.bf16.msra.mxu0 %v1386
    %1963 = vmatprep.subr.bf16.mxu0 0
    %1964 = vmatpush1.bf16.msra.mxu0 %v1391
    %1965 = vmatprep.subr.bf16.mxu0 0
    %1966 = vmatpush1.bf16.msra.mxu0 %v1396
    %1967 = vmatprep.subr.bf16.mxu0 0
    %1968 = vmatpush1.bf16.msra.mxu0 %v1401
    %1969 = vmatprep.subr.bf16.mxu0 0
    %1970 = vmatpush1.bf16.msra.mxu0 %v1406
    %1971 = vmatprep.subr.bf16.mxu0 0
    %1972 = vmatpush1.bf16.msra.mxu0 %v1411
    %1973 = vmatprep.subr.bf16.mxu0 0
    %1974 = vmatpush1.bf16.msra.mxu0 %v1416
    %1975 = vmatprep.mubr.bf16.mxu0 %v348
    %1976 = vmatmul.mubr.bf16.gmra.mrb[0].mxu0 %v347
    %v1977 = vpop.f32.mrb[0].mxu0
    %v1978 = vadd.f32 %v1938, %v1977
    %v1979 = vpop.f32.mrb[0].mxu0
    %v1980 = vpop.f32.mrb[0].mxu0
    %v1981 = vpop.f32.mrb[0].mxu0
    %1982 = vdwg.mxu0
    %1983 = vmatprep.subr.bf16.mxu0 0
    %1984 = vmatpush1.bf16.msra.mxu0 %v1421
    %1985 = vmatprep.subr.bf16.mxu0 0
    %1986 = vmatpush1.bf16.msra.mxu0 %v1426
    %1987 = vmatprep.subr.bf16.mxu0 0
    %1988 = vmatpush1.bf16.msra.mxu0 %v1431
    %1989 = vmatprep.subr.bf16.mxu0 0
    %1990 = vmatpush1.bf16.msra.mxu0 %v1436
    %1991 = vmatprep.subr.bf16.mxu0 0
    %1992 = vmatpush1.bf16.msra.mxu0 %v1441
    %1993 = vmatprep.subr.bf16.mxu0 0
    %1994 = vmatpush1.bf16.msra.mxu0 %v1446
    %1995 = vmatprep.subr.bf16.mxu0 0
    %1996 = vmatpush1.bf16.msra.mxu0 %v1451
    %1997 = vmatprep.subr.bf16.mxu0 0
    %1998 = vmatpush1.bf16.msra.mxu0 %v1456
    %1999 = vmatprep.subr.bf16.mxu0 0
    %2000 = vmatpush1.bf16.msra.mxu0 0
    %2001 = vmatprep.subr.bf16.mxu0 0
    %2002 = vmatpush1.bf16.msra.mxu0 0
    %2003 = vmatprep.subr.bf16.mxu0 0
    %2004 = vmatpush1.bf16.msra.mxu0 0
    %2005 = vmatprep.subr.bf16.mxu0 0
    %2006 = vmatpush1.bf16.msra.mxu0 0
    %2007 = vmatprep.subr.bf16.mxu0 0
    %2008 = vmatpush1.bf16.msra.mxu0 0
    %2009 = vmatprep.subr.bf16.mxu0 0
    %2010 = vmatpush1.bf16.msra.mxu0 0
    %2011 = vmatprep.subr.bf16.mxu0 0
    %2012 = vmatpush1.bf16.msra.mxu0 0
    %2013 = vmatprep.subr.bf16.mxu0 0
    %2014 = vmatpush1.bf16.msra.mxu0 0
    %2015 = vmatprep.mubr.bf16.mxu0 0
    %2016 = vmatmul.mubr.bf16.gmra.mrb[0].mxu0 %v349
    %v2017 = vpop.f32.mrb[0].mxu0
    %v2018 = vadd.f32 %v1978, %v2017
    %v2019 = vpop.f32.mrb[0].mxu0
    %v2020 = vpop.f32.mrb[0].mxu0
    %v2021 = vpop.f32.mrb[0].mxu0
    %2022 = vdwg.mxu0
    %v2023 = vmax.f32 %v1774, 0.0
    %v2024 = vmax.f32 %v1776, 0.0
    %v2025 = vmax.f32 %v1897, 0.0
    %v2026 = vmax.f32 %v1899, 0.0
    %v2027 = vmax.f32 %v2018, 0.0
    %v2028 = vld [vmem:[%s5] sm:$0x1f]
    %v2030 = vlaneseq
    %v2031 = vshrl.u32 %v2030, 7
    %v2032 = vsub.s32 0, %v2031
    %v2033 = vrot.slane %v2028, %v2032
    %v2034 = vlaneseq
    %v2035 = vshrl.u32 %v2034, 7
    %v2036 = vsub.s32 1, %v2035
    %v2037 = vrot.slane %v2028, %v2036
    %v2038 = vlaneseq
    %v2039 = vshrl.u32 %v2038, 7
    %v2040 = vsub.s32 2, %v2039
    %v2041 = vrot.slane %v2028, %v2040
    %v2042 = vlaneseq
    %v2043 = vshrl.u32 %v2042, 7
    %v2044 = vsub.s32 3, %v2043
    %v2045 = vrot.slane %v2028, %v2044
    %v2046 = vlaneseq
    %v2047 = vshrl.u32 %v2046, 7
    %v2048 = vsub.s32 4, %v2047
    %v2049 = vrot.slane %v2028, %v2048
    %v2055 = vmul.f32 %v2023, %v2033
    %v2056 = vmul.f32 %v2024, %v2037
    %v2057 = vmul.f32 %v2025, %v2041
    %v2058 = vmul.f32 %v2026, %v2045
    %v2059 = vmul.f32 %v2027, %v2049
    %v2060 = vadd.f32 %v2055, %v2056
    %v2061 = vadd.f32 %v2060, %v2057
    %v2062 = vadd.f32 %v2061, %v2058
    %v2063 = vadd.f32 %v2062, %v2059
    %2064 = vadd.xlane.f32.xlu0 %v2063
    %v2065 = vpop.xlane.xlu0 %2064
    %v2066 = vld [vmem:[#allocation2] sm:$0x1]
    %v2068 = vlaneseq
    %v2069 = vshrl.u32 %v2068, 7
    %v2070 = vsub.s32 0, %v2069
    %v2071 = vrot.slane %v2066, %v2070
    %v2073 = vadd.f32 %v2065, %v2071
    %vm2074 = vcmask 7168
    %2075 = vst.msk [vmem:[%s7] sm:$0xff] %vm2074, %v2073
    // Predicated region
    $region38: #{critic_forward.1} parent=1 // pred_check
      _
    $region39: #{critic_forward.1} parent=1 // pred_check_branch
      %2077 = sbr.rel (0) target = $region41
    $region40: #{critic_forward.1} parent=1 // pred_region
      _
    $region41: #{critic_forward.1} parent=1 // pred_fallthru
      _
    // Predicated region
    $region42: #{critic_forward.1} parent=1 // pred_check
      _
    $region43: #{critic_forward.1} parent=1 // pred_check_branch
      %2079 = sbr.rel (0) target = $region45
    $region44: #{critic_forward.1} parent=1 // pred_region
      _
    $region45: #{critic_forward.1} parent=1 // pred_fallthru
      _
    %2080 = vsyncpa [#allocation4], 1
    %2081 = vsyncpa [#allocation6], 1

</llo_original>
